<compile_context>
chip_gen: v7x
topology: tpu7x:2x2x1
jax: 0.10.0
libtpu: 0.0.40
codegen_flags: <defaults>
</compile_context>

<pallas_src>
import functools

import jax
import jax.numpy as jnp
import numpy as np
from jax.experimental import pallas as pl
from jax.experimental.pallas import tpu as pltpu


def _hard_sigmoid(x):
    # PyTorch nn.Hardsigmoid: clip(x/6 + 0.5, 0, 1)
    return jnp.clip(x / 6.0 + 0.5, 0.0, 1.0)


# --------------------------------------------------------------------------- #
# Kernel A: scale-aware gate + channel-mean map g.
#   grid = (B, phase, S//tS)
#     phase 0: acc[l,c] += sum_{s in tile} w[s] * F[l,s,c]      (MXU matmuls)
#     phase 1: at s==0 finalize pi = hardsig(relu(acc + bias)) and emit it;
#              every step emit g_tile[l,s] = mean_c(F * pi)     (f1 stays in VMEM)
# --------------------------------------------------------------------------- #
def _scale_g_kernel(f_ref, w_ref, b_ref, pi_ref, g_ref, pi_acc):
    phase = pl.program_id(1)
    sidx = pl.program_id(2)
    L = f_ref.shape[1]

    @pl.when((phase == 0) & (sidx == 0))
    def _():
        pi_acc[...] = jnp.zeros_like(pi_acc)

    @pl.when(phase == 0)
    def _():
        f = f_ref[0].astype(jnp.float32)                       # (L, tS, C)
        w = w_ref[0]                                           # (1, tS)
        parts = [jnp.dot(w, f[l], preferred_element_type=jnp.float32)
                 for l in range(L)]                            # each (1, C)
        pi_acc[...] += jnp.concatenate(parts, axis=0)          # (L, C)

    @pl.when((phase == 1) & (sidx == 0))
    def _():
        a = pi_acc[...] + b_ref[...]                           # (L, C) + (1, 1)
        pi_acc[...] = _hard_sigmoid(jax.nn.relu(a))
        pi_ref[0] = pi_acc[...]

    @pl.when(phase == 1)
    def _():
        f = f_ref[0].astype(jnp.float32)                       # (L, tS, C)
        f1 = f * pi_acc[...][:, None, :]
        g_ref[0, 0] = jnp.mean(f1, axis=-1)                    # (L, tS)


# --------------------------------------------------------------------------- #
# Kernel B: apply spatial mask + task-aware (DyReLU) gating.
#   grid = (B, phase, S//tS)
#     phase 0: z_acc += sum_{l, s in tile} F*pi*mask            (f2 stays in VMEM)
#     phase 1: at s==0 run the tiny MLP on the global mean z;
#              every step recompute f2, gate, write the output tile.
# --------------------------------------------------------------------------- #
def _spatial_task_kernel(f_ref, pi_ref, mask_ref, w1_ref, b1_ref, w2_ref,
                         b2_ref, out_ref, z_acc, ab_buf, *, inv_ls):
    phase = pl.program_id(1)
    sidx = pl.program_id(2)
    C = f_ref.shape[3]

    def f2_tile():
        f = f_ref[0].astype(jnp.float32)                       # (L, tS, C)
        return f * pi_ref[0][:, None, :] * mask_ref[0, 0][:, :, None]

    @pl.when((phase == 0) & (sidx == 0))
    def _():
        z_acc[...] = jnp.zeros_like(z_acc)

    @pl.when(phase == 0)
    def _():
        t = jnp.sum(f2_tile(), axis=0)                         # (tS, C)
        z_acc[...] += jnp.sum(t, axis=0, keepdims=True)        # (1, C)

    @pl.when((phase == 1) & (sidx == 0))
    def _():
        z = z_acc[...] * inv_ls                                # global (L,S)-mean
        h = jax.nn.relu(jnp.dot(z, w1_ref[...],
                                preferred_element_type=jnp.float32) + b1_ref[...])
        th = jnp.dot(h, w2_ref[...],
                     preferred_element_type=jnp.float32) + b2_ref[...]
        ab_buf[...] = 2.0 * jax.nn.sigmoid(th) - 1.0           # (1, 4C)

    @pl.when(phase == 1)
    def _():
        f2 = f2_tile()
        th = ab_buf[...]
        a1 = th[:, 0 * C:1 * C] + 1.0        # init_a = [1, 0]
        a2 = th[:, 1 * C:2 * C]
        bb1 = th[:, 2 * C:3 * C] * 0.5       # lambda_b = 0.5
        bb2 = th[:, 3 * C:4 * C] * 0.5
        y1 = f2 * a1 + bb1
        y2 = f2 * a2 + bb2
        out_ref[0] = jnp.maximum(y1, y2).astype(out_ref.dtype)


# --------------------------------------------------------------------------- #
# Glue: 3x3 cross-level conv on the small channel-mean map g (pure layout work)
# --------------------------------------------------------------------------- #
def _im2col_levels(g, H, W):
    # g: (B, L, S) -> (B, 9L, S); flattening order is [l * 9 + tap]
    B, L, S = g.shape
    g4 = g.reshape(B, L, H, W)
    gp = jnp.pad(g4, ((0, 0), (0, 0), (1, 1), (1, 1)))
    taps = [gp[:, :, dy:dy + H, dx:dx + W] for dy in range(3) for dx in range(3)]
    p = jnp.stack(taps, axis=2)                                # (B, L, 9, H, W)
    return p.reshape(B, L * 9, H * W)


def _default_s_tile(S):
    for t in (512, 256, 128, 64, 32, 16, 8):
        if t <= S and S % t == 0:
            return t
    return S


def _compiler_params():
    return pltpu.CompilerParams(
        dimension_semantics=("parallel", "arbitrary", "arbitrary"),
        vmem_limit_bytes=48 * 1024 * 1024)


@functools.partial(jax.jit, static_argnames=("H", "W", "s_tile"))
def dyhead_block(f, params, H, W, s_tile=None):
    w_s, b_s, w_sp, b_sp, w1, b1, w2, b2 = params
    B, L, S, C = f.shape
    Cr = w1.shape[1]
    tS = _default_s_tile(S) if s_tile is None else s_tile
    assert S % tS == 0 and (tS % 8 == 0 or tS == S)
    nS = S // tS

    # scale weights (1, S) re-laid out as one lane-dense (1, tS) row per S tile
    w_tiled = w_s.reshape(nS, tS)[:, None, :]

    # ---- kernel A: scale gate + channel-mean map ---------------------------
    pi, g_t = pl.pallas_call(
        _scale_g_kernel,
        grid=(B, 2, nS),
        in_specs=[
            pl.BlockSpec((1, L, tS, C), lambda b, p, s: (b, 0, s, 0)),
            pl.BlockSpec((1, 1, tS), lambda b, p, s: (s, 0, 0)),
            pl.BlockSpec((1, 1), lambda b, p, s: (0, 0)),
        ],
        out_specs=[
            pl.BlockSpec((1, L, C), lambda b, p, s: (b, 0, 0)),
            # phase-gated block index: stays at tile 0 during the accumulation
            # phase so no garbage tiles are flushed before real data is written.
            pl.BlockSpec((1, 1, L, tS), lambda b, p, s: (b, s * p, 0, 0)),
        ],
        out_shape=[
            jax.ShapeDtypeStruct((B, L, C), jnp.float32),
            jax.ShapeDtypeStruct((B, nS, L, tS), jnp.float32),
        ],
        scratch_shapes=[pltpu.VMEM((L, C), jnp.float32)],
        compiler_params=_compiler_params(),
    )(f, w_tiled, b_s)

    # ---- tiny JAX glue: 3x3 cross-level conv on g (C-times smaller than F) --
    g = g_t.transpose(0, 2, 1, 3).reshape(B, L, S)
    patches = _im2col_levels(g, H, W)                              # (B, 9L, S)
    m = jnp.einsum("ok,bks->bos", w_sp, patches) + b_sp[None]      # (B, L, S)
    mask = _hard_sigmoid(jax.nn.relu(m))
    mask_t = mask.reshape(B, L, nS, tS).transpose(0, 2, 1, 3)      # (B, nS, L, tS)

    # ---- kernel B: spatial mask applied + task-aware gating ----------------
    out = pl.pallas_call(
        functools.partial(_spatial_task_kernel, inv_ls=1.0 / float(L * S)),
        grid=(B, 2, nS),
        in_specs=[
            pl.BlockSpec((1, L, tS, C), lambda b, p, s: (b, 0, s, 0)),
            pl.BlockSpec((1, L, C), lambda b, p, s: (b, 0, 0)),
            pl.BlockSpec((1, 1, L, tS), lambda b, p, s: (b, s, 0, 0)),
            pl.BlockSpec((C, Cr), lambda b, p, s: (0, 0)),
            pl.BlockSpec((1, Cr), lambda b, p, s: (0, 0)),
            pl.BlockSpec((Cr, 4 * C), lambda b, p, s: (0, 0)),
            pl.BlockSpec((1, 4 * C), lambda b, p, s: (0, 0)),
        ],
        out_specs=pl.BlockSpec((1, L, tS, C), lambda b, p, s: (b, 0, s * p, 0)),
        out_shape=jax.ShapeDtypeStruct((B, L, S, C), f.dtype),
        scratch_shapes=[pltpu.VMEM((1, C), jnp.float32),
                        pltpu.VMEM((1, 4 * C), jnp.float32)],
        compiler_params=_compiler_params(),
    )(f, pi, mask_t, w1, b1, w2, b2)
    return out


# --------------------------------------------------------------------------- #
# Pure-JAX reference (same math) for correctness checking
# --------------------------------------------------------------------------- #
def dyhead_ref(f, params, H, W):
    w_s, b_s, w_sp, b_sp, w1, b1, w2, b2 = params
    B, L, S, C = f.shape
    a = jnp.sum(f * w_s[0][None, None, :, None], axis=2) + b_s[0, 0]   # (B, L, C)
    a = _hard_sigmoid(jax.nn.relu(a))
    f1 = f * a[:, :, None, :]
    g = jnp.mean(f1, axis=-1)                                          # (B, L, S)
    p = _im2col_levels(g, H, W)                                        # (B, 9L, S)
    m = jnp.einsum("ok,bks->bos", w_sp, p) + b_sp[None]
    mask = _hard_sigmoid(jax.nn.relu(m))                               # (B, L, S)
    f2 = f1 * mask[..., None]
    z = jnp.mean(f2, axis=(1, 2))                                      # (B, C)
    h = jax.nn.relu(jnp.dot(z, w1) + b1)
    th = jnp.dot(h, w2) + b2
    th = 2.0 * jax.nn.sigmoid(th) - 1.0
    a1 = th[:, 0 * C:1 * C] + 1.0
    a2 = th[:, 1 * C:2 * C]
    bb1 = th[:, 2 * C:3 * C] * 0.5
    bb2 = th[:, 3 * C:4 * C] * 0.5
    y1 = f2 * a1[:, None, None, :] + bb1[:, None, None, :]
    y2 = f2 * a2[:, None, None, :] + bb2[:, None, None, :]
    return jnp.maximum(y1, y2)


if __name__ == "__main__":
    B, L, H, W, C = 2, 4, 8, 8, 16
    S = H * W
    Cr = max(C // 4, 4)

    key = jax.random.PRNGKey(0)
    k = jax.random.split(key, 8)

    # Snap inputs to bf16-representable values so the (default-precision) MXU
    # matmuls in the kernel incur no truncation error vs. the f32 reference.
    def snap(x):
        return x.astype(jnp.bfloat16).astype(jnp.float32)

    F_tensor = snap(jax.random.normal(k[0], (B, L, S, C), dtype=jnp.float32))

    # Deterministic synthetic parameters (shapes implied by the module's L/S/C).
    w_s = snap(0.2 * jax.random.normal(k[1], (1, S), dtype=jnp.float32))       # scale-aware conv over S
    b_s = snap(jnp.full((1, 1), 0.1, dtype=jnp.float32))
    w_sp = snap(0.2 * jax.random.normal(k[2], (L, L * 9), dtype=jnp.float32))  # 3x3 cross-level conv
    b_sp = snap(0.05 * jax.random.normal(k[3], (L, 1), dtype=jnp.float32))
    w1 = snap(0.2 * jax.random.normal(k[4], (C, Cr), dtype=jnp.float32))       # task-aware MLP fc1
    b1 = jnp.zeros((1, Cr), dtype=jnp.float32)
    w2 = snap(0.2 * jax.random.normal(k[5], (Cr, 4 * C), dtype=jnp.float32))   # task-aware MLP fc2
    b2 = snap(0.05 * jax.random.normal(k[6], (1, 4 * C), dtype=jnp.float32))
    params = (w_s, b_s, w_sp, b_sp, w1, b1, w2, b2)

    # s_tile=32 -> 2 S-tiles at this toy size, exercising the tiled accumulation
    # phases; at production sizes the default picks up to 512 spatial rows/tile.
    out = jax.block_until_ready(dyhead_block(F_tensor, params, H, W, s_tile=32))
    ref = jax.block_until_ready(dyhead_ref(F_tensor, params, H, W))

    np.testing.assert_allclose(np.asarray(out), np.asarray(ref), rtol=2e-3, atol=2e-3)
    assert out.shape == (B, L, S, C) and out.dtype == jnp.float32

    print("KERNEL_OK")
</pallas_src>

<mosaic_0001>
module attributes {stable_mosaic.version = 11 : i64} {
  func.func @_scale_g_kernel(%arg0: i32, %arg1: i32, %arg2: i32, %arg3: memref<1x4x32x16xf32, #tpu.memory_space<vmem>>, %arg4: memref<1x1x32xf32, #tpu.memory_space<vmem>>, %arg5: memref<1x1xf32, #tpu.memory_space<vmem>>, %arg6: memref<1x4x16xf32, #tpu.memory_space<vmem>>, %arg7: memref<1x1x4x32xf32, #tpu.memory_space<vmem>>, %arg8: memref<4x16xf32, #tpu.memory_space<vmem>>) attributes {dimension_semantics = [#tpu.dimension_semantics<parallel>, #tpu.dimension_semantics<arbitrary>, #tpu.dimension_semantics<arbitrary>], iteration_bounds = array<i64: 2, 2, 2>, scalar_prefetch = 0 : i64, scratch_operands = 1 : i64, tpu.core_type = #tpu.core_type<tc>, window_params = [{transform_indices = @transform_0, window_bounds = array<i64: 1, 4, 32, 16>}, {transform_indices = @transform_1, window_bounds = array<i64: 1, 1, 32>}, {pipeline_mode = #tpu.pipeline_mode<synchronous>, transform_indices = @transform_2, window_bounds = array<i64: 1, 1>}, {transform_indices = @transform_3, window_bounds = array<i64: 1, 4, 16>}, {transform_indices = @transform_4, window_bounds = array<i64: 1, 1, 4, 32>}]} {
    %c0_i32 = arith.constant 0 : i32
    %0 = arith.cmpi eq, %arg1, %c0_i32 : i32
    %c0_i32_0 = arith.constant 0 : i32
    %1 = arith.cmpi eq, %arg2, %c0_i32_0 : i32
    %2 = arith.andi %0, %1 : i1
    %3 = arith.extui %2 : i1 to i32
    %c0_i32_1 = arith.constant 0 : i32
    %4 = arith.cmpi ne, %3, %c0_i32_1 : i32
    scf.if %4 {
      %cst = arith.constant 0.000000e+00 : f32
      %16 = vector.broadcast %cst : f32 to vector<4x16xf32>
      %c0 = arith.constant 0 : index
      %c0_8 = arith.constant 0 : index
      %17 = vector.load %arg8[%c0, %c0_8] : memref<4x16xf32, #tpu.memory_space<vmem>>, vector<4x16xf32>
      tpu.vector_store %arg8[%c0, %c0_8], %16 {strides = array<i32>} : memref<4x16xf32, #tpu.memory_space<vmem>>, vector<4x16xf32>,
    } else {
    }
    %c0_i32_2 = arith.constant 0 : i32
    %5 = arith.cmpi eq, %arg1, %c0_i32_2 : i32
    %6 = arith.extui %5 : i1 to i32
    %c0_i32_3 = arith.constant 0 : i32
    %7 = arith.cmpi ne, %6, %c0_i32_3 : i32
    scf.if %7 {
      %c0 = arith.constant 0 : index
      %c0_8 = arith.constant 0 : index
      %c0_9 = arith.constant 0 : index
      %c0_10 = arith.constant 0 : index
      %16 = vector.load %arg3[%c0, %c0_8, %c0_9, %c0_10] : memref<1x4x32x16xf32, #tpu.memory_space<vmem>>, vector<1x4x32x16xf32>
      %17 = vector.shape_cast %16 : vector<1x4x32x16xf32> to vector<4x32x16xf32>
      %c0_11 = arith.constant 0 : index
      %c0_12 = arith.constant 0 : index
      %c0_13 = arith.constant 0 : index
      %18 = vector.load %arg4[%c0_11, %c0_12, %c0_13] : memref<1x1x32xf32, #tpu.memory_space<vmem>>, vector<1x1x32xf32>
      %19 = vector.shape_cast %18 : vector<1x1x32xf32> to vector<1x32xf32>
      %20 = vector.extract_strided_slice %17 {offsets = [0, 0, 0], sizes = [1, 32, 16], strides = [1, 1, 1]} : vector<4x32x16xf32> to vector<1x32x16xf32>
      %21 = vector.shape_cast %20 : vector<1x32x16xf32> to vector<32x16xf32>
      %cst = arith.constant dense<0.000000e+00> : vector<1x16xf32>
      %22 = tpu.matmul %19, %21, %cst {dimension_numbers = #tpu.dot_dimension_numbers<[1], [0], [0], [1], [0, 0, 1, 1], [], []>} : vector<1x32xf32>, vector<32x16xf32>, vector<1x16xf32> -> vector<1x16xf32>
      %23 = vector.extract_strided_slice %17 {offsets = [1, 0, 0], sizes = [1, 32, 16], strides = [1, 1, 1]} : vector<4x32x16xf32> to vector<1x32x16xf32>
      %24 = vector.shape_cast %23 : vector<1x32x16xf32> to vector<32x16xf32>
      %cst_14 = arith.constant dense<0.000000e+00> : vector<1x16xf32>
      %25 = tpu.matmul %19, %24, %cst_14 {dimension_numbers = #tpu.dot_dimension_numbers<[1], [0], [0], [1], [0, 0, 1, 1], [], []>} : vector<1x32xf32>, vector<32x16xf32>, vector<1x16xf32> -> vector<1x16xf32>
      %26 = vector.extract_strided_slice %17 {offsets = [2, 0, 0], sizes = [1, 32, 16], strides = [1, 1, 1]} : vector<4x32x16xf32> to vector<1x32x16xf32>
      %27 = vector.shape_cast %26 : vector<1x32x16xf32> to vector<32x16xf32>
      %cst_15 = arith.constant dense<0.000000e+00> : vector<1x16xf32>
      %28 = tpu.matmul %19, %27, %cst_15 {dimension_numbers = #tpu.dot_dimension_numbers<[1], [0], [0], [1], [0, 0, 1, 1], [], []>} : vector<1x32xf32>, vector<32x16xf32>, vector<1x16xf32> -> vector<1x16xf32>
      %29 = vector.extract_strided_slice %17 {offsets = [3, 0, 0], sizes = [1, 32, 16], strides = [1, 1, 1]} : vector<4x32x16xf32> to vector<1x32x16xf32>
      %30 = vector.shape_cast %29 : vector<1x32x16xf32> to vector<32x16xf32>
      %cst_16 = arith.constant dense<0.000000e+00> : vector<1x16xf32>
      %31 = tpu.matmul %19, %30, %cst_16 {dimension_numbers = #tpu.dot_dimension_numbers<[1], [0], [0], [1], [0, 0, 1, 1], [], []>} : vector<1x32xf32>, vector<32x16xf32>, vector<1x16xf32> -> vector<1x16xf32>
      %c0_17 = arith.constant 0 : index
      %c0_18 = arith.constant 0 : index
      %32 = vector.load %arg8[%c0_17, %c0_18] : memref<4x16xf32, #tpu.memory_space<vmem>>, vector<4x16xf32>
      %33 = tpu.concatenate %22, %25, %28, %31 in 0 : vector<1x16xf32>, vector<1x16xf32>, vector<1x16xf32>, vector<1x16xf32> -> vector<4x16xf32>
      %34 = arith.addf %32, %33 : vector<4x16xf32>
      %c0_19 = arith.constant 0 : index
      %c0_20 = arith.constant 0 : index
      %35 = vector.load %arg8[%c0_19, %c0_20] : memref<4x16xf32, #tpu.memory_space<vmem>>, vector<4x16xf32>
      tpu.vector_store %arg8[%c0_19, %c0_20], %34 {strides = array<i32>} : memref<4x16xf32, #tpu.memory_space<vmem>>, vector<4x16xf32>,
    } else {
    }
    %c1_i32 = arith.constant 1 : i32
    %8 = arith.cmpi eq, %arg1, %c1_i32 : i32
    %c0_i32_4 = arith.constant 0 : i32
    %9 = arith.cmpi eq, %arg2, %c0_i32_4 : i32
    %10 = arith.andi %8, %9 : i1
    %11 = arith.extui %10 : i1 to i32
    %c0_i32_5 = arith.constant 0 : i32
    %12 = arith.cmpi ne, %11, %c0_i32_5 : i32
    scf.if %12 {
      %c0 = arith.constant 0 : index
      %c0_8 = arith.constant 0 : index
      %16 = vector.load %arg8[%c0, %c0_8] : memref<4x16xf32, #tpu.memory_space<vmem>>, vector<4x16xf32>
      %c0_9 = arith.constant 0 : index
      %c0_10 = arith.constant 0 : index
      %17 = vector.load %arg5[%c0_9, %c0_10] : memref<1x1xf32, #tpu.memory_space<vmem>>, vector<1x1xf32>
      %18 = vector.broadcast %17 : vector<1x1xf32> to vector<4x16xf32>
      %19 = arith.addf %16, %18 : vector<4x16xf32>
      %cst = arith.constant 0.000000e+00 : f32
      %20 = vector.broadcast %cst : f32 to vector<4x16xf32>
      %21 = arith.maximumf %19, %20 : vector<4x16xf32>
      %cst_11 = arith.constant 6.000000e+00 : f32
      %22 = vector.broadcast %cst_11 : f32 to vector<4x16xf32>
      %23 = arith.divf %21, %22 : vector<4x16xf32>
      %cst_12 = arith.constant 5.000000e-01 : f32
      %24 = vector.broadcast %cst_12 : f32 to vector<4x16xf32>
      %25 = arith.addf %23, %24 : vector<4x16xf32>
      %cst_13 = arith.constant 0.000000e+00 : f32
      %cst_14 = arith.constant 1.000000e+00 : f32
      %26 = vector.broadcast %cst_13 : f32 to vector<4x16xf32>
      %27 = arith.maximumf %26, %25 : vector<4x16xf32>
      %28 = vector.broadcast %cst_14 : f32 to vector<4x16xf32>
      %29 = arith.minimumf %28, %27 : vector<4x16xf32>
      %c0_15 = arith.constant 0 : index
      %c0_16 = arith.constant 0 : index
      %30 = vector.load %arg8[%c0_15, %c0_16] : memref<4x16xf32, #tpu.memory_space<vmem>>, vector<4x16xf32>
      tpu.vector_store %arg8[%c0_15, %c0_16], %29 {strides = array<i32>} : memref<4x16xf32, #tpu.memory_space<vmem>>, vector<4x16xf32>,
      %c0_17 = arith.constant 0 : index
      %c0_18 = arith.constant 0 : index
      %31 = vector.load %arg8[%c0_17, %c0_18] : memref<4x16xf32, #tpu.memory_space<vmem>>, vector<4x16xf32>
      %c0_19 = arith.constant 0 : index
      %c0_20 = arith.constant 0 : index
      %c0_21 = arith.constant 0 : index
      %32 = vector.load %arg6[%c0_19, %c0_20, %c0_21] : memref<1x4x16xf32, #tpu.memory_space<vmem>>, vector<1x4x16xf32>
      %33 = vector.shape_cast %32 : vector<1x4x16xf32> to vector<4x16xf32>
      %34 = vector.shape_cast %31 : vector<4x16xf32> to vector<1x4x16xf32>
      tpu.vector_store %arg6[%c0_19, %c0_20, %c0_21], %34 {strides = array<i32>} : memref<1x4x16xf32, #tpu.memory_space<vmem>>, vector<1x4x16xf32>,
    } else {
    }
    %c1_i32_6 = arith.constant 1 : i32
    %13 = arith.cmpi eq, %arg1, %c1_i32_6 : i32
    %14 = arith.extui %13 : i1 to i32
    %c0_i32_7 = arith.constant 0 : i32
    %15 = arith.cmpi ne, %14, %c0_i32_7 : i32
    scf.if %15 {
      %c0 = arith.constant 0 : index
      %c0_8 = arith.constant 0 : index
      %c0_9 = arith.constant 0 : index
      %c0_10 = arith.constant 0 : index
      %16 = vector.load %arg3[%c0, %c0_8, %c0_9, %c0_10] : memref<1x4x32x16xf32, #tpu.memory_space<vmem>>, vector<1x4x32x16xf32>
      %17 = vector.shape_cast %16 : vector<1x4x32x16xf32> to vector<4x32x16xf32>
      %c0_11 = arith.constant 0 : index
      %c0_12 = arith.constant 0 : index
      %18 = vector.load %arg8[%c0_11, %c0_12] : memref<4x16xf32, #tpu.memory_space<vmem>>, vector<4x16xf32>
      %19 = vector.shape_cast %18 : vector<4x16xf32> to vector<4x1x16xf32>
      %20 = vector.broadcast %19 : vector<4x1x16xf32> to vector<4x32x16xf32>
      %21 = arith.mulf %17, %20 : vector<4x32x16xf32>
      %cst = arith.constant dense<0.000000e+00> : vector<4x32xf32>
      %22 = vector.multi_reduction <add>, %21, %cst [2] : vector<4x32x16xf32> to vector<4x32xf32>
      %cst_13 = arith.constant 1.600000e+01 : f32
      %23 = vector.broadcast %cst_13 : f32 to vector<4x32xf32>
      %24 = arith.divf %22, %23 : vector<4x32xf32>
      %c0_14 = arith.constant 0 : index
      %c0_15 = arith.constant 0 : index
      %c0_16 = arith.constant 0 : index
      %c0_17 = arith.constant 0 : index
      %25 = vector.load %arg7[%c0_14, %c0_15, %c0_16, %c0_17] : memref<1x1x4x32xf32, #tpu.memory_space<vmem>>, vector<1x1x4x32xf32>
      %26 = vector.shape_cast %25 : vector<1x1x4x32xf32> to vector<4x32xf32>
      %27 = vector.shape_cast %24 : vector<4x32xf32> to vector<1x1x4x32xf32>
      tpu.vector_store %arg7[%c0_14, %c0_15, %c0_16, %c0_17], %27 {strides = array<i32>} : memref<1x1x4x32xf32, #tpu.memory_space<vmem>>, vector<1x1x4x32xf32>,
    } else {
    }
    return
  }
  func.func @transform_0(%arg0: i32, %arg1: i32, %arg2: i32) -> (i32, i32, i32, i32) {
    %c0_i32 = arith.constant 0 : i32
    %c0_i32_0 = arith.constant 0 : i32
    %c0_i32_1 = arith.constant 0 : i32
    return %arg0, %c0_i32, %arg2, %c0_i32_0 : i32, i32, i32, i32
  }
  func.func @transform_1(%arg0: i32, %arg1: i32, %arg2: i32) -> (i32, i32, i32) {
    %c0_i32 = arith.constant 0 : i32
    %c0_i32_0 = arith.constant 0 : i32
    %c0_i32_1 = arith.constant 0 : i32
    return %arg2, %c0_i32, %c0_i32_0 : i32, i32, i32
  }
  func.func @transform_2(%arg0: i32, %arg1: i32, %arg2: i32) -> (i32, i32) {
    %c0_i32 = arith.constant 0 : i32
    %c0_i32_0 = arith.constant 0 : i32
    %c0_i32_1 = arith.constant 0 : i32
    return %c0_i32, %c0_i32_0 : i32, i32
  }
  func.func @transform_3(%arg0: i32, %arg1: i32, %arg2: i32) -> (i32, i32, i32) {
    %c0_i32 = arith.constant 0 : i32
    %c0_i32_0 = arith.constant 0 : i32
    %c0_i32_1 = arith.constant 0 : i32
    return %arg0, %c0_i32, %c0_i32_0 : i32, i32, i32
  }
  func.func @transform_4(%arg0: i32, %arg1: i32, %arg2: i32) -> (i32, i32, i32, i32) {
    %0 = arith.muli %arg2, %arg1 : i32
    %c0_i32 = arith.constant 0 : i32
    %c0_i32_0 = arith.constant 0 : i32
    %c0_i32_1 = arith.constant 0 : i32
    return %arg0, %0, %c0_i32, %c0_i32_0 : i32, i32, i32, i32
  }
}

module attributes {stable_mosaic.version = 11 : i64} {
  func.func @_spatial_task_kernel(%arg0: i32, %arg1: i32, %arg2: i32, %arg3: memref<1x4x32x16xf32, #tpu.memory_space<vmem>>, %arg4: memref<1x4x16xf32, #tpu.memory_space<vmem>>, %arg5: memref<1x1x4x32xf32, #tpu.memory_space<vmem>>, %arg6: memref<16x4xf32, #tpu.memory_space<vmem>>, %arg7: memref<1x4xf32, #tpu.memory_space<vmem>>, %arg8: memref<4x64xf32, #tpu.memory_space<vmem>>, %arg9: memref<1x64xf32, #tpu.memory_space<vmem>>, %arg10: memref<1x4x32x16xf32, #tpu.memory_space<vmem>>, %arg11: memref<1x16xf32, #tpu.memory_space<vmem>>, %arg12: memref<1x64xf32, #tpu.memory_space<vmem>>) attributes {dimension_semantics = [#tpu.dimension_semantics<parallel>, #tpu.dimension_semantics<arbitrary>, #tpu.dimension_semantics<arbitrary>], iteration_bounds = array<i64: 2, 2, 2>, scalar_prefetch = 0 : i64, scratch_operands = 2 : i64, tpu.core_type = #tpu.core_type<tc>, window_params = [{transform_indices = @transform_0, window_bounds = array<i64: 1, 4, 32, 16>}, {transform_indices = @transform_1, window_bounds = array<i64: 1, 4, 16>}, {transform_indices = @transform_2, window_bounds = array<i64: 1, 1, 4, 32>}, {pipeline_mode = #tpu.pipeline_mode<synchronous>, transform_indices = @transform_3, window_bounds = array<i64: 16, 4>}, {pipeline_mode = #tpu.pipeline_mode<synchronous>, transform_indices = @transform_4, window_bounds = array<i64: 1, 4>}, {pipeline_mode = #tpu.pipeline_mode<synchronous>, transform_indices = @transform_5, window_bounds = array<i64: 4, 64>}, {pipeline_mode = #tpu.pipeline_mode<synchronous>, transform_indices = @transform_6, window_bounds = array<i64: 1, 64>}, {transform_indices = @transform_7, window_bounds = array<i64: 1, 4, 32, 16>}]} {
    %c0_i32 = arith.constant 0 : i32
    %0 = arith.cmpi eq, %arg1, %c0_i32 : i32
    %c0_i32_0 = arith.constant 0 : i32
    %1 = arith.cmpi eq, %arg2, %c0_i32_0 : i32
    %2 = arith.andi %0, %1 : i1
    %3 = arith.extui %2 : i1 to i32
    %c0_i32_1 = arith.constant 0 : i32
    %4 = arith.cmpi ne, %3, %c0_i32_1 : i32
    scf.if %4 {
      %cst = arith.constant 0.000000e+00 : f32
      %16 = vector.broadcast %cst : f32 to vector<1x16xf32>
      %c0 = arith.constant 0 : index
      %c0_8 = arith.constant 0 : index
      %17 = vector.load %arg11[%c0, %c0_8] : memref<1x16xf32, #tpu.memory_space<vmem>>, vector<1x16xf32>
      tpu.vector_store %arg11[%c0, %c0_8], %16 {strides = array<i32>} : memref<1x16xf32, #tpu.memory_space<vmem>>, vector<1x16xf32>,
    } else {
    }
    %c0_i32_2 = arith.constant 0 : i32
    %5 = arith.cmpi eq, %arg1, %c0_i32_2 : i32
    %6 = arith.extui %5 : i1 to i32
    %c0_i32_3 = arith.constant 0 : i32
    %7 = arith.cmpi ne, %6, %c0_i32_3 : i32
    scf.if %7 {
      %c0 = arith.constant 0 : index
      %c0_8 = arith.constant 0 : index
      %c0_9 = arith.constant 0 : index
      %c0_10 = arith.constant 0 : index
      %16 = vector.load %arg3[%c0, %c0_8, %c0_9, %c0_10] : memref<1x4x32x16xf32, #tpu.memory_space<vmem>>, vector<1x4x32x16xf32>
      %17 = vector.shape_cast %16 : vector<1x4x32x16xf32> to vector<4x32x16xf32>
      %c0_11 = arith.constant 0 : index
      %c0_12 = arith.constant 0 : index
      %c0_13 = arith.constant 0 : index
      %18 = vector.load %arg4[%c0_11, %c0_12, %c0_13] : memref<1x4x16xf32, #tpu.memory_space<vmem>>, vector<1x4x16xf32>
      %19 = vector.shape_cast %18 : vector<1x4x16xf32> to vector<4x16xf32>
      %20 = vector.shape_cast %19 : vector<4x16xf32> to vector<4x1x16xf32>
      %21 = vector.broadcast %20 : vector<4x1x16xf32> to vector<4x32x16xf32>
      %22 = arith.mulf %17, %21 : vector<4x32x16xf32>
      %c0_14 = arith.constant 0 : index
      %c0_15 = arith.constant 0 : index
      %c0_16 = arith.constant 0 : index
      %c0_17 = arith.constant 0 : index
      %23 = vector.load %arg5[%c0_14, %c0_15, %c0_16, %c0_17] : memref<1x1x4x32xf32, #tpu.memory_space<vmem>>, vector<1x1x4x32xf32>
      %24 = vector.shape_cast %23 : vector<1x1x4x32xf32> to vector<4x32xf32>
      %25 = vector.shape_cast %24 : vector<4x32xf32> to vector<4x32x1xf32>
      %26 = vector.broadcast %25 : vector<4x32x1xf32> to vector<4x32x16xf32>
      %27 = arith.mulf %22, %26 : vector<4x32x16xf32>
      %cst = arith.constant dense<0.000000e+00> : vector<32x16xf32>
      %28 = vector.multi_reduction <add>, %27, %cst [0] : vector<4x32x16xf32> to vector<32x16xf32>
      %c0_18 = arith.constant 0 : index
      %c0_19 = arith.constant 0 : index
      %29 = vector.load %arg11[%c0_18, %c0_19] : memref<1x16xf32, #tpu.memory_space<vmem>>, vector<1x16xf32>
      %cst_20 = arith.constant dense<0.000000e+00> : vector<16xf32>
      %30 = vector.multi_reduction <add>, %28, %cst_20 [0] : vector<32x16xf32> to vector<16xf32>
      %31 = vector.shape_cast %30 : vector<16xf32> to vector<1x16xf32>
      %32 = arith.addf %29, %31 : vector<1x16xf32>
      %c0_21 = arith.constant 0 : index
      %c0_22 = arith.constant 0 : index
      %33 = vector.load %arg11[%c0_21, %c0_22] : memref<1x16xf32, #tpu.memory_space<vmem>>, vector<1x16xf32>
      tpu.vector_store %arg11[%c0_21, %c0_22], %32 {strides = array<i32>} : memref<1x16xf32, #tpu.memory_space<vmem>>, vector<1x16xf32>,
    } else {
    }
    %c1_i32 = arith.constant 1 : i32
    %8 = arith.cmpi eq, %arg1, %c1_i32 : i32
    %c0_i32_4 = arith.constant 0 : i32
    %9 = arith.cmpi eq, %arg2, %c0_i32_4 : i32
    %10 = arith.andi %8, %9 : i1
    %11 = arith.extui %10 : i1 to i32
    %c0_i32_5 = arith.constant 0 : i32
    %12 = arith.cmpi ne, %11, %c0_i32_5 : i32
    scf.if %12 {
      %c0 = arith.constant 0 : index
      %c0_8 = arith.constant 0 : index
      %16 = vector.load %arg11[%c0, %c0_8] : memref<1x16xf32, #tpu.memory_space<vmem>>, vector<1x16xf32>
      %cst = arith.constant 3.906250e-03 : f32
      %17 = vector.broadcast %cst : f32 to vector<1x16xf32>
      %18 = arith.mulf %16, %17 : vector<1x16xf32>
      %c0_9 = arith.constant 0 : index
      %c0_10 = arith.constant 0 : index
      %19 = vector.load %arg6[%c0_9, %c0_10] : memref<16x4xf32, #tpu.memory_space<vmem>>, vector<16x4xf32>
      %cst_11 = arith.constant dense<0.000000e+00> : vector<1x4xf32>
      %20 = tpu.matmul %18, %19, %cst_11 {dimension_numbers = #tpu.dot_dimension_numbers<[1], [0], [0], [1], [0, 0, 1, 1], [], []>} : vector<1x16xf32>, vector<16x4xf32>, vector<1x4xf32> -> vector<1x4xf32>
      %c0_12 = arith.constant 0 : index
      %c0_13 = arith.constant 0 : index
      %21 = vector.load %arg7[%c0_12, %c0_13] : memref<1x4xf32, #tpu.memory_space<vmem>>, vector<1x4xf32>
      %22 = arith.addf %20, %21 : vector<1x4xf32>
      %cst_14 = arith.constant 0.000000e+00 : f32
      %23 = vector.broadcast %cst_14 : f32 to vector<1x4xf32>
      %24 = arith.maximumf %22, %23 : vector<1x4xf32>
      %c0_15 = arith.constant 0 : index
      %c0_16 = arith.constant 0 : index
      %25 = vector.load %arg8[%c0_15, %c0_16] : memref<4x64xf32, #tpu.memory_space<vmem>>, vector<4x64xf32>
      %cst_17 = arith.constant dense<0.000000e+00> : vector<1x64xf32>
      %26 = tpu.matmul %24, %25, %cst_17 {dimension_numbers = #tpu.dot_dimension_numbers<[1], [0], [0], [1], [0, 0, 1, 1], [], []>} : vector<1x4xf32>, vector<4x64xf32>, vector<1x64xf32> -> vector<1x64xf32>
      %c0_18 = arith.constant 0 : index
      %c0_19 = arith.constant 0 : index
      %27 = vector.load %arg9[%c0_18, %c0_19] : memref<1x64xf32, #tpu.memory_space<vmem>>, vector<1x64xf32>
      %28 = arith.addf %26, %27 : vector<1x64xf32>
      %29 = arith.negf %28 : vector<1x64xf32>
      %30 = math.exp %29 : vector<1x64xf32>
      %cst_20 = arith.constant 1.000000e+00 : f32
      %31 = vector.broadcast %cst_20 : f32 to vector<1x64xf32>
      %32 = arith.addf %31, %30 : vector<1x64xf32>
      %33 = arith.divf %31, %32 : vector<1x64xf32>
      %cst_21 = arith.constant 2.000000e+00 : f32
      %34 = vector.broadcast %cst_21 : f32 to vector<1x64xf32>
      %35 = arith.mulf %34, %33 : vector<1x64xf32>
      %cst_22 = arith.constant 1.000000e+00 : f32
      %36 = vector.broadcast %cst_22 : f32 to vector<1x64xf32>
      %37 = arith.subf %35, %36 : vector<1x64xf32>
      %c0_23 = arith.constant 0 : index
      %c0_24 = arith.constant 0 : index
      %38 = vector.load %arg12[%c0_23, %c0_24] : memref<1x64xf32, #tpu.memory_space<vmem>>, vector<1x64xf32>
      tpu.vector_store %arg12[%c0_23, %c0_24], %37 {strides = array<i32>} : memref<1x64xf32, #tpu.memory_space<vmem>>, vector<1x64xf32>,
    } else {
    }
    %c1_i32_6 = arith.constant 1 : i32
    %13 = arith.cmpi eq, %arg1, %c1_i32_6 : i32
    %14 = arith.extui %13 : i1 to i32
    %c0_i32_7 = arith.constant 0 : i32
    %15 = arith.cmpi ne, %14, %c0_i32_7 : i32
    scf.if %15 {
      %c0 = arith.constant 0 : index
      %c0_8 = arith.constant 0 : index
      %c0_9 = arith.constant 0 : index
      %c0_10 = arith.constant 0 : index
      %16 = vector.load %arg3[%c0, %c0_8, %c0_9, %c0_10] : memref<1x4x32x16xf32, #tpu.memory_space<vmem>>, vector<1x4x32x16xf32>
      %17 = vector.shape_cast %16 : vector<1x4x32x16xf32> to vector<4x32x16xf32>
      %c0_11 = arith.constant 0 : index
      %c0_12 = arith.constant 0 : index
      %c0_13 = arith.constant 0 : index
      %18 = vector.load %arg4[%c0_11, %c0_12, %c0_13] : memref<1x4x16xf32, #tpu.memory_space<vmem>>, vector<1x4x16xf32>
      %19 = vector.shape_cast %18 : vector<1x4x16xf32> to vector<4x16xf32>
      %20 = vector.shape_cast %19 : vector<4x16xf32> to vector<4x1x16xf32>
      %21 = vector.broadcast %20 : vector<4x1x16xf32> to vector<4x32x16xf32>
      %22 = arith.mulf %17, %21 : vector<4x32x16xf32>
      %c0_14 = arith.constant 0 : index
      %c0_15 = arith.constant 0 : index
      %c0_16 = arith.constant 0 : index
      %c0_17 = arith.constant 0 : index
      %23 = vector.load %arg5[%c0_14, %c0_15, %c0_16, %c0_17] : memref<1x1x4x32xf32, #tpu.memory_space<vmem>>, vector<1x1x4x32xf32>
      %24 = vector.shape_cast %23 : vector<1x1x4x32xf32> to vector<4x32xf32>
      %25 = vector.shape_cast %24 : vector<4x32xf32> to vector<4x32x1xf32>
      %26 = vector.broadcast %25 : vector<4x32x1xf32> to vector<4x32x16xf32>
      %27 = arith.mulf %22, %26 : vector<4x32x16xf32>
      %c0_18 = arith.constant 0 : index
      %c0_19 = arith.constant 0 : index
      %28 = vector.load %arg12[%c0_18, %c0_19] : memref<1x64xf32, #tpu.memory_space<vmem>>, vector<1x64xf32>
      %29 = vector.extract_strided_slice %28 {offsets = [0, 0], sizes = [1, 16], strides = [1, 1]} : vector<1x64xf32> to vector<1x16xf32>
      %cst = arith.constant 1.000000e+00 : f32
      %30 = vector.broadcast %cst : f32 to vector<1x16xf32>
      %31 = arith.addf %29, %30 : vector<1x16xf32>
      %32 = vector.extract_strided_slice %28 {offsets = [0, 16], sizes = [1, 16], strides = [1, 1]} : vector<1x64xf32> to vector<1x16xf32>
      %33 = vector.extract_strided_slice %28 {offsets = [0, 32], sizes = [1, 16], strides = [1, 1]} : vector<1x64xf32> to vector<1x16xf32>
      %cst_20 = arith.constant 5.000000e-01 : f32
      %34 = vector.broadcast %cst_20 : f32 to vector<1x16xf32>
      %35 = arith.mulf %33, %34 : vector<1x16xf32>
      %36 = vector.extract_strided_slice %28 {offsets = [0, 48], sizes = [1, 16], strides = [1, 1]} : vector<1x64xf32> to vector<1x16xf32>
      %cst_21 = arith.constant 5.000000e-01 : f32
      %37 = vector.broadcast %cst_21 : f32 to vector<1x16xf32>
      %38 = arith.mulf %36, %37 : vector<1x16xf32>
      %39 = vector.shape_cast %31 : vector<1x16xf32> to vector<1x1x16xf32>
      %40 = vector.broadcast %39 : vector<1x1x16xf32> to vector<4x32x16xf32>
      %41 = arith.mulf %27, %40 : vector<4x32x16xf32>
      %42 = vector.shape_cast %35 : vector<1x16xf32> to vector<1x1x16xf32>
      %43 = vector.broadcast %42 : vector<1x1x16xf32> to vector<4x32x16xf32>
      %44 = arith.addf %41, %43 : vector<4x32x16xf32>
      %45 = vector.shape_cast %32 : vector<1x16xf32> to vector<1x1x16xf32>
      %46 = vector.broadcast %45 : vector<1x1x16xf32> to vector<4x32x16xf32>
      %47 = arith.mulf %27, %46 : vector<4x32x16xf32>
      %48 = vector.shape_cast %38 : vector<1x16xf32> to vector<1x1x16xf32>
      %49 = vector.broadcast %48 : vector<1x1x16xf32> to vector<4x32x16xf32>
      %50 = arith.addf %47, %49 : vector<4x32x16xf32>
      %51 = arith.maximumf %44, %50 : vector<4x32x16xf32>
      %c0_22 = arith.constant 0 : index
      %c0_23 = arith.constant 0 : index
      %c0_24 = arith.constant 0 : index
      %c0_25 = arith.constant 0 : index
      %52 = vector.load %arg10[%c0_22, %c0_23, %c0_24, %c0_25] : memref<1x4x32x16xf32, #tpu.memory_space<vmem>>, vector<1x4x32x16xf32>
      %53 = vector.shape_cast %52 : vector<1x4x32x16xf32> to vector<4x32x16xf32>
      %54 = vector.shape_cast %51 : vector<4x32x16xf32> to vector<1x4x32x16xf32>
      tpu.vector_store %arg10[%c0_22, %c0_23, %c0_24, %c0_25], %54 {strides = array<i32>} : memref<1x4x32x16xf32, #tpu.memory_space<vmem>>, vector<1x4x32x16xf32>,
    } else {
    }
    return
  }
  func.func @transform_0(%arg0: i32, %arg1: i32, %arg2: i32) -> (i32, i32, i32, i32) {
    %c0_i32 = arith.constant 0 : i32
    %c0_i32_0 = arith.constant 0 : i32
    %c0_i32_1 = arith.constant 0 : i32
    return %arg0, %c0_i32, %arg2, %c0_i32_0 : i32, i32, i32, i32
  }
  func.func @transform_1(%arg0: i32, %arg1: i32, %arg2: i32) -> (i32, i32, i32) {
    %c0_i32 = arith.constant 0 : i32
    %c0_i32_0 = arith.constant 0 : i32
    %c0_i32_1 = arith.constant 0 : i32
    return %arg0, %c0_i32, %c0_i32_0 : i32, i32, i32
  }
  func.func @transform_2(%arg0: i32, %arg1: i32, %arg2: i32) -> (i32, i32, i32, i32) {
    %c0_i32 = arith.constant 0 : i32
    %c0_i32_0 = arith.constant 0 : i32
    %c0_i32_1 = arith.constant 0 : i32
    return %arg0, %arg2, %c0_i32, %c0_i32_0 : i32, i32, i32, i32
  }
  func.func @transform_3(%arg0: i32, %arg1: i32, %arg2: i32) -> (i32, i32) {
    %c0_i32 = arith.constant 0 : i32
    %c0_i32_0 = arith.constant 0 : i32
    %c0_i32_1 = arith.constant 0 : i32
    return %c0_i32, %c0_i32_0 : i32, i32
  }
  func.func @transform_4(%arg0: i32, %arg1: i32, %arg2: i32) -> (i32, i32) {
    %c0_i32 = arith.constant 0 : i32
    %c0_i32_0 = arith.constant 0 : i32
    %c0_i32_1 = arith.constant 0 : i32
    return %c0_i32, %c0_i32_0 : i32, i32
  }
  func.func @transform_5(%arg0: i32, %arg1: i32, %arg2: i32) -> (i32, i32) {
    %c0_i32 = arith.constant 0 : i32
    %c0_i32_0 = arith.constant 0 : i32
    %c0_i32_1 = arith.constant 0 : i32
    return %c0_i32, %c0_i32_0 : i32, i32
  }
  func.func @transform_6(%arg0: i32, %arg1: i32, %arg2: i32) -> (i32, i32) {
    %c0_i32 = arith.constant 0 : i32
    %c0_i32_0 = arith.constant 0 : i32
    %c0_i32_1 = arith.constant 0 : i32
    return %c0_i32, %c0_i32_0 : i32, i32
  }
  func.func @transform_7(%arg0: i32, %arg1: i32, %arg2: i32) -> (i32, i32, i32, i32) {
    %0 = arith.muli %arg2, %arg1 : i32
    %c0_i32 = arith.constant 0 : i32
    %c0_i32_0 = arith.constant 0 : i32
    %c0_i32_1 = arith.constant 0 : i32
    return %arg0, %c0_i32, %0, %c0_i32_0 : i32, i32, i32, i32
  }
}

</mosaic_0001>

<llo_original>
// kernel: dyhead_block.2
$region0: #{dyhead_block.2}
  #allocation0 [shape = 'u32[]', space=smem, size = 0x4, offset = 0x4, fixed_abs, tag = 'smem constant byte address 0x4 - core index']
  #allocation1 [shape = 'u32[144,128]{1,0:T(1,128)}', space=vmem, size = 0x12000, scoped, tag = 'internal scratch']
  #allocation2 [shape = 'f32[4,16]{1,0:T(4,128)}', space=vmem, size = 0x800, scoped, tag = 'scratch operand']
  #allocation3 [shape = 'f32[1,1]{1,0:T(1,128)S(1)}', space=vmem, size = 0x200, scoped, tag = 'scoped memory for dyhead_block.2']
  %s0 = inlined_call_operand.vmem [shape: f32[2,4,64,16], index: 0, kind: input, shape index: {}]
  %s1 = inlined_call_operand.vmem [shape: f32[2,1,32], index: 1, kind: input, shape index: {}]
  %s2 = inlined_call_operand.<no memory space> [shape: f32[1,1], index: 2, kind: input, shape index: {}]
  %s3 = inlined_call_operand.vmem [shape: f32[2,4,16], index: 3, kind: output, shape index: {0}]
  %s4 = inlined_call_operand.vmem [shape: f32[2,2,4,32], index: 4, kind: output, shape index: {1}]
  %5 = xla_tuple %s3, %s4
  %s6 = sld [smem:[#allocation0]]
  $region107: #{dyhead_block.2} parent=0
    _
  %s8 = ssub.s32 1, %s6
  %s9 = scalar_select 0, %s8, %s6
  %v10 = vstv %s2
  %11 = vst [vmem:[#allocation3] sm:$0x1] %v10
  $region1: #{dyhead_block.2} parent=0
    #allocation4 [shape = 'u8[131072]{0}', space=vmem, size = 0x20000, scoped, tag = 'input window, operand 0']
    loop: start=0, step=1, limit=10
    $region2: #{dyhead_block.2} parent=1 // loop_pre_header
      _
    $region3: #{dyhead_block.2} parent=1 // loop_header
      %s13 = sphi 0, %s17
      %p14 = scmp.ge.s32.totalorder %s13, 10
      %s20 = sphi 0, %s39
      %s21 = sphi 0, %s35
      %s22 = sphi 0, %s31
      %s23 = sphi 0, %s20
      %s24 = sphi 0, %s21
      %s25 = sphi 0, %s22
      %s26 = sphi 0, %s23
      %s27 = sphi 0, %s24
      %s28 = sphi 0, %s25
      %s44 = sphi 0, %s46
      %s47 = sphi 0, %s44
      %s48 = sphi 0, %s47
      %s64 = sphi 0, %s48
      %s70 = sphi 0, %s72
      %s73 = sphi 0, %s70
      %s74 = sphi 0, %s73
      %s90 = sphi 0, %s74
      %s94 = sphi 0, %s94
      %s96 = sphi 0, %s94
      %s97 = sphi 0, %s96
      %s111 = sphi 0, %s97
      %s117 = sphi 0, %s119
      %s120 = sphi 0, %s117
      %s121 = sphi 0, %s120
      %s137 = sphi 0, %s121
      %s147 = sphi 0, %s149
      %s150 = sphi 0, %s147
      %s151 = sphi 0, %s150
      %s167 = sphi 0, %s151
    $region4: #{dyhead_block.2} parent=1 // loop_header_branch
      %16 = sbr.rel (%p14) target = $region8
    $region5: #{dyhead_block.2} parent=1 // loop_body
      %s18 = ssub.s32 %s13, 1
      %s19 = ssub.s32 %s13, 2
      %s29 = sadd.s32 1, %s22
      %p30 = scmp.ge.s32.totalorder %s29, 2
      %s31 = scalar_select %p30, 0, %s29
      %s32 = sadd.s32 1, %s21
      %s33 = scalar_select %p30, %s32, %s21
      %p34 = scmp.ge.s32.totalorder %s33, 2
      %s35 = scalar_select %p34, 0, %s33
      %s36 = sadd.s32 1, %s20
      %s37 = scalar_select %p34, %s36, %s20
      %p38 = scmp.ge.s32.totalorder %s37, 2
      %s39 = scalar_select %p38, 0, %s37
      %s40 = ssub.s32 %s20, %s39
      %s41 = ssub.s32 %s22, %s31
      %s42 = sor.u32 %s40, %s41
      %p43 = scmp.eq.s32.totalorder %s42, 0
      %s45 = sadd.s32 %s44, 1
      %s46 = scalar_select %p43, %s44, %s45
      %p49 = pneg %p43
      %p50 = scmp.eq.s32.totalorder %s13, 7
      %p51 = por %p49, %p50
      %p52 = scmp.ne.s32.totalorder %s44, %s47
      %p53 = scmp.eq.s32.totalorder %s13, 0
      %p54 = por %p52, %p53
      %p55 = scmp.ne.s32.totalorder %s44, %s47
      %p56 = scmp.eq.s32.totalorder %s18, 7
      %p57 = por %p55, %p56
      %p58 = scmp.ne.s32.totalorder %s47, %s48
      %p59 = scmp.eq.s32.totalorder %s18, 0
      %p60 = por %p58, %p59
      %p61 = scmp.ne.s32.totalorder %s47, %s48
      %p62 = scmp.eq.s32.totalorder %s19, 7
      %p63 = por %p61, %p62
      %p65 = scmp.ne.s32.totalorder %s48, %s64
      %p66 = scmp.eq.s32.totalorder %s19, 0
      %p67 = por %p65, %p66
      %s68 = ssub.s32 %s22, %s31
      %p69 = scmp.eq.s32.totalorder %s68, 0
      %s71 = sadd.s32 %s70, 1
      %s72 = scalar_select %p69, %s70, %s71
      %p75 = pneg %p69
      %p76 = scmp.eq.s32.totalorder %s13, 7
      %p77 = por %p75, %p76
      %p78 = scmp.ne.s32.totalorder %s70, %s73
      %p79 = scmp.eq.s32.totalorder %s13, 0
      %p80 = por %p78, %p79
      %p81 = scmp.ne.s32.totalorder %s70, %s73
      %p82 = scmp.eq.s32.totalorder %s18, 7
      %p83 = por %p81, %p82
      %p84 = scmp.ne.s32.totalorder %s73, %s74
      %p85 = scmp.eq.s32.totalorder %s18, 0
      %p86 = por %p84, %p85
      %p87 = scmp.ne.s32.totalorder %s73, %s74
      %p88 = scmp.eq.s32.totalorder %s19, 7
      %p89 = por %p87, %p88
      %p91 = scmp.ne.s32.totalorder %s74, %s90
      %p92 = scmp.eq.s32.totalorder %s19, 0
      %p93 = por %p91, %p92
      %s95 = sadd.s32 %s94, 1
      %p98 = scmp.eq.s32.totalorder %s13, 7
      %p99 = scmp.ne.s32.totalorder %s94, %s96
      %p100 = scmp.eq.s32.totalorder %s13, 0
      %p101 = por %p99, %p100
      %p102 = scmp.ne.s32.totalorder %s94, %s96
      %p103 = scmp.eq.s32.totalorder %s18, 7
      %p104 = por %p102, %p103
      %p105 = scmp.ne.s32.totalorder %s96, %s97
      %p106 = scmp.eq.s32.totalorder %s18, 0
      %p107 = por %p105, %p106
      %p108 = scmp.ne.s32.totalorder %s96, %s97
      %p109 = scmp.eq.s32.totalorder %s19, 7
      %p110 = por %p108, %p109
      %p112 = scmp.ne.s32.totalorder %s97, %s111
      %p113 = scmp.eq.s32.totalorder %s19, 0
      %p114 = por %p112, %p113
      %s115 = ssub.s32 %s20, %s39
      %p116 = scmp.eq.s32.totalorder %s115, 0
      %s118 = sadd.s32 %s117, 1
      %s119 = scalar_select %p116, %s117, %s118
      %p122 = pneg %p116
      %p123 = scmp.eq.s32.totalorder %s13, 7
      %p124 = por %p122, %p123
      %p125 = scmp.ne.s32.totalorder %s117, %s120
      %p126 = scmp.eq.s32.totalorder %s13, 0
      %p127 = por %p125, %p126
      %p128 = scmp.ne.s32.totalorder %s117, %s120
      %p129 = scmp.eq.s32.totalorder %s18, 7
      %p130 = por %p128, %p129
      %p131 = scmp.ne.s32.totalorder %s120, %s121
      %p132 = scmp.eq.s32.totalorder %s18, 0
      %p133 = por %p131, %p132
      %p134 = scmp.ne.s32.totalorder %s120, %s121
      %p135 = scmp.eq.s32.totalorder %s19, 7
      %p136 = por %p134, %p135
      %p138 = scmp.ne.s32.totalorder %s121, %s137
      %p139 = scmp.eq.s32.totalorder %s19, 0
      %p140 = por %p138, %p139
      %s141 = smul.u32 %s22, %s21
      %s142 = smul.u32 %s31, %s35
      %s143 = ssub.s32 %s20, %s39
      %s144 = ssub.s32 %s141, %s142
      %s145 = sor.u32 %s143, %s144
      %p146 = scmp.eq.s32.totalorder %s145, 0
      %s148 = sadd.s32 %s147, 1
      %s149 = scalar_select %p146, %s147, %s148
      %p152 = pneg %p146
      %p153 = scmp.eq.s32.totalorder %s13, 7
      %p154 = por %p152, %p153
      %p155 = scmp.ne.s32.totalorder %s147, %s150
      %p156 = scmp.eq.s32.totalorder %s13, 0
      %p157 = por %p155, %p156
      %p158 = scmp.ne.s32.totalorder %s147, %s150
      %p159 = scmp.eq.s32.totalorder %s18, 7
      %p160 = por %p158, %p159
      %p161 = scmp.ne.s32.totalorder %s150, %s151
      %p162 = scmp.eq.s32.totalorder %s18, 0
      %p163 = por %p161, %p162
      %p164 = scmp.ne.s32.totalorder %s150, %s151
      %p165 = scmp.eq.s32.totalorder %s19, 7
      %p166 = por %p164, %p165
      %p168 = scmp.ne.s32.totalorder %s151, %s167
      %p169 = scmp.eq.s32.totalorder %s19, 0
      %p170 = por %p168, %p169
      %p171 = scmp.le.s32.totalorder 1, %s13
      %p172 = scmp.lt.s32.totalorder %s13, 9
      %p173 = pnand %p171, %p172
      %p174 = pneg %p173
      // Predicated region
      $region9: #{dyhead_block.2} parent=5 // pred_check
        _
      $region10: #{dyhead_block.2} parent=5 // pred_check_branch
        %176 = sbr.rel (%p173) target = $region12
      $region11: #{dyhead_block.2} parent=5 // pred_region
        %s177 = ssub.s32 %s13, 1
        // Predicated region
        $region13: #{dyhead_block.2} parent=11 // pred_check
          %p178 = pneg %p107
        $region14: #{dyhead_block.2} parent=11 // pred_check_branch
          %180 = sbr.rel (%p178) target = $region16
        $region15: #{dyhead_block.2} parent=11 // pred_region
          _
        $region16: #{dyhead_block.2} parent=11 // pred_fallthru
          _
      $region12: #{dyhead_block.2} parent=5 // pred_fallthru
        _
      %p181 = scmp.lt.s32.totalorder %s13, 8
      // Predicated region
      $region17: #{dyhead_block.2} parent=5 // pred_check
        %p182 = pneg %p181
      $region18: #{dyhead_block.2} parent=5 // pred_check_branch
        %184 = sbr.rel (%p182) target = $region20
      $region19: #{dyhead_block.2} parent=5 // pred_region
        // Predicated region
        $region21: #{dyhead_block.2} parent=19 // pred_check
          %p185 = pneg %p54
        $region22: #{dyhead_block.2} parent=19 // pred_check_branch
          %187 = sbr.rel (%p185) target = $region24
        $region23: #{dyhead_block.2} parent=19 // pred_region
          %s188 = sand.u32 %s44, 1
          %s189 = sand.u32 %s44, 1
          %s190 = smul.addr %s189, 128
          %s191 = scalar_lea.vmem [#allocation4], %s190
          %s192 = smul.u32 4, %s22
          %s193 = smul.addr %s20, 32
          %s194 = sadd.s32 %s192, %s193
          %s195 = smul.addr %s194, 8
          %s196 = scalar_lea.vmem %s0, %s195
          // Predicated region
          $region25: #{dyhead_block.2} parent=23 // pred_check
            _
          $region26: #{dyhead_block.2} parent=23 // pred_check_branch
            %198 = sbr.rel (0) target = $region28
          $region27: #{dyhead_block.2} parent=23 // pred_region
            // Predicated region
            $region29: #{dyhead_block.2} parent=27 // pred_check
              _
            $region30: #{dyhead_block.2} parent=27 // pred_check_branch
              %200 = sbr.rel (0) target = $region32
            $region31: #{dyhead_block.2} parent=27 // pred_region
              // Predicated region
              $region44: #{dyhead_block.2} parent=31 // pred_check
                _
              $region45: #{dyhead_block.2} parent=31 // pred_check_branch
                %245 = sbr.rel (0) target = $region47
              $region46: #{dyhead_block.2} parent=31 // pred_region
                loop: start=0, step=1, limit=1
                $region48: #{dyhead_block.2} parent=46 // loop_pre_header
                  _
                $region49: #{dyhead_block.2} parent=46 // loop_header
                  %s247 = sphi 0, %s251
                  %p248 = scmp.ge.s32.totalorder %s247, 1
                  %s252 = sphi %s196, %s196
                  %s253 = sphi %s191, %s191
                $region50: #{dyhead_block.2} parent=46 // loop_header_branch
                  %250 = sbr.rel (%p248) target = $region54
                $region51: #{dyhead_block.2} parent=46 // loop_body
                  %v254 = vld [vmem:[%s252] sm:$0xff]
                  %255 = vst [vmem:[%s253] sm:$0xff] %v254
                  %v256 = vld [vmem:[%s252 + $0x8] sm:$0xff]
                  %257 = vst [vmem:[%s253 + $0x8] sm:$0xff] %v256
                  %v258 = vld [vmem:[%s252 + $0x10] sm:$0xff]
                  %259 = vst [vmem:[%s253 + $0x10] sm:$0xff] %v258
                  %v260 = vld [vmem:[%s252 + $0x18] sm:$0xff]
                  %261 = vst [vmem:[%s253 + $0x18] sm:$0xff] %v260
                  %v262 = vld [vmem:[%s252 + $0x40] sm:$0xff]
                  %263 = vst [vmem:[%s253 + $0x20] sm:$0xff] %v262
                  %v264 = vld [vmem:[%s252 + $0x48] sm:$0xff]
                  %265 = vst [vmem:[%s253 + $0x28] sm:$0xff] %v264
                  %v266 = vld [vmem:[%s252 + $0x50] sm:$0xff]
                  %267 = vst [vmem:[%s253 + $0x30] sm:$0xff] %v266
                  %v268 = vld [vmem:[%s252 + $0x58] sm:$0xff]
                  %269 = vst [vmem:[%s253 + $0x38] sm:$0xff] %v268
                  %v270 = vld [vmem:[%s252 + $0x80] sm:$0xff]
                  %271 = vst [vmem:[%s253 + $0x40] sm:$0xff] %v270
                  %v272 = vld [vmem:[%s252 + $0x88] sm:$0xff]
                  %273 = vst [vmem:[%s253 + $0x48] sm:$0xff] %v272
                  %v274 = vld [vmem:[%s252 + $0x90] sm:$0xff]
                  %275 = vst [vmem:[%s253 + $0x50] sm:$0xff] %v274
                  %v276 = vld [vmem:[%s252 + $0x98] sm:$0xff]
                  %277 = vst [vmem:[%s253 + $0x58] sm:$0xff] %v276
                  %v278 = vld [vmem:[%s252 + $0xc0] sm:$0xff]
                  %279 = vst [vmem:[%s253 + $0x60] sm:$0xff] %v278
                  %v280 = vld [vmem:[%s252 + $0xc8] sm:$0xff]
                  %281 = vst [vmem:[%s253 + $0x68] sm:$0xff] %v280
                  %v282 = vld [vmem:[%s252 + $0xd0] sm:$0xff]
                  %283 = vst [vmem:[%s253 + $0x70] sm:$0xff] %v282
                  %v284 = vld [vmem:[%s252 + $0xd8] sm:$0xff]
                  %285 = vst [vmem:[%s253 + $0x78] sm:$0xff] %v284
                $region52: #{dyhead_block.2} parent=46 // loop_footer
                  %s251 = sadd.s32 1, %s247
                $region53: #{dyhead_block.2} parent=46 // loop_footer_branch
                  %246 = sbr.rel target = $region49
                $region54: #{dyhead_block.2} parent=46 // loop_exit
                  _
              $region47: #{dyhead_block.2} parent=31 // pred_fallthru
                _
              // Predicated region
              $region55: #{dyhead_block.2} parent=31 // pred_check
                _
              $region56: #{dyhead_block.2} parent=31 // pred_check_branch
                %287 = sbr.rel target = $region58
              $region57: #{dyhead_block.2} parent=31 // pred_region
                _
              $region58: #{dyhead_block.2} parent=31 // pred_fallthru
                _
            $region32: #{dyhead_block.2} parent=27 // pred_fallthru
              _
            // Predicated region
            $region33: #{dyhead_block.2} parent=27 // pred_check
              _
            $region34: #{dyhead_block.2} parent=27 // pred_check_branch
              %202 = sbr.rel target = $region36
            $region35: #{dyhead_block.2} parent=27 // pred_region
              loop: start=0, step=1, limit=1
              $region37: #{dyhead_block.2} parent=35 // loop_pre_header
                _
              $region38: #{dyhead_block.2} parent=35 // loop_header
                %s205 = sphi 0, %s209
                %p206 = scmp.ge.s32.totalorder %s205, 1
                %s210 = sphi %s196, %s196
                %s211 = sphi %s191, %s191
              $region39: #{dyhead_block.2} parent=35 // loop_header_branch
                %208 = sbr.rel (%p206) target = $region43
              $region40: #{dyhead_block.2} parent=35 // loop_body
                %v212 = vld [vmem:[%s210] sm:$0xff]
                %213 = vst [vmem:[%s211] sm:$0xff] %v212
                %v214 = vld [vmem:[%s210 + $0x8] sm:$0xff]
                %215 = vst [vmem:[%s211 + $0x8] sm:$0xff] %v214
                %v216 = vld [vmem:[%s210 + $0x10] sm:$0xff]
                %217 = vst [vmem:[%s211 + $0x10] sm:$0xff] %v216
                %v218 = vld [vmem:[%s210 + $0x18] sm:$0xff]
                %219 = vst [vmem:[%s211 + $0x18] sm:$0xff] %v218
                %v220 = vld [vmem:[%s210 + $0x40] sm:$0xff]
                %221 = vst [vmem:[%s211 + $0x20] sm:$0xff] %v220
                %v222 = vld [vmem:[%s210 + $0x48] sm:$0xff]
                %223 = vst [vmem:[%s211 + $0x28] sm:$0xff] %v222
                %v224 = vld [vmem:[%s210 + $0x50] sm:$0xff]
                %225 = vst [vmem:[%s211 + $0x30] sm:$0xff] %v224
                %v226 = vld [vmem:[%s210 + $0x58] sm:$0xff]
                %227 = vst [vmem:[%s211 + $0x38] sm:$0xff] %v226
                %v228 = vld [vmem:[%s210 + $0x80] sm:$0xff]
                %229 = vst [vmem:[%s211 + $0x40] sm:$0xff] %v228
                %v230 = vld [vmem:[%s210 + $0x88] sm:$0xff]
                %231 = vst [vmem:[%s211 + $0x48] sm:$0xff] %v230
                %v232 = vld [vmem:[%s210 + $0x90] sm:$0xff]
                %233 = vst [vmem:[%s211 + $0x50] sm:$0xff] %v232
                %v234 = vld [vmem:[%s210 + $0x98] sm:$0xff]
                %235 = vst [vmem:[%s211 + $0x58] sm:$0xff] %v234
                %v236 = vld [vmem:[%s210 + $0xc0] sm:$0xff]
                %237 = vst [vmem:[%s211 + $0x60] sm:$0xff] %v236
                %v238 = vld [vmem:[%s210 + $0xc8] sm:$0xff]
                %239 = vst [vmem:[%s211 + $0x68] sm:$0xff] %v238
                %v240 = vld [vmem:[%s210 + $0xd0] sm:$0xff]
                %241 = vst [vmem:[%s211 + $0x70] sm:$0xff] %v240
                %v242 = vld [vmem:[%s210 + $0xd8] sm:$0xff]
                %243 = vst [vmem:[%s211 + $0x78] sm:$0xff] %v242
              $region41: #{dyhead_block.2} parent=35 // loop_footer
                %s209 = sadd.s32 1, %s205
              $region42: #{dyhead_block.2} parent=35 // loop_footer_branch
                %204 = sbr.rel target = $region38
              $region43: #{dyhead_block.2} parent=35 // loop_exit
                _
            $region36: #{dyhead_block.2} parent=27 // pred_fallthru
              _
          $region28: #{dyhead_block.2} parent=23 // pred_fallthru
            _
          %288 = vnop
        $region24: #{dyhead_block.2} parent=19 // pred_fallthru
          _
        // Predicated region
        $region59: #{dyhead_block.2} parent=19 // pred_check
          %p289 = pneg %p80
        $region60: #{dyhead_block.2} parent=19 // pred_check_branch
          %291 = sbr.rel (%p289) target = $region62
        $region61: #{dyhead_block.2} parent=19 // pred_region
          %p292 = scmp.lt.s32.totalorder %s22, 1
          %s293 = scalar_select %p292, %s22, 1
          %s294 = scalar_lea.vmem %s1, %s293
        $region62: #{dyhead_block.2} parent=19 // pred_fallthru
          _
      $region20: #{dyhead_block.2} parent=5 // pred_fallthru
        _
      %p295 = scmp.le.s32.totalorder 1, %s13
      %p296 = scmp.lt.s32.totalorder %s13, 9
      %p297 = pnand %p295, %p296
      %p298 = pneg %p297
      // Predicated region
      $region63: #{dyhead_block.2} parent=5 // pred_check
        _
      $region64: #{dyhead_block.2} parent=5 // pred_check_branch
        %300 = sbr.rel (%p297) target = $region66
      $region65: #{dyhead_block.2} parent=5 // pred_region
        %s301 = ssub.s32 %s13, 1
        %s302 = sand.u32 %s47, 1
        %s303 = sand.u32 %s47, 1
        %s304 = smul.addr %s303, 128
        %s305 = scalar_lea.vmem [#allocation4], %s304
        // Predicated region
        $region67: #{dyhead_block.2} parent=65 // pred_check
          %p306 = pneg %p60
        $region68: #{dyhead_block.2} parent=65 // pred_check_branch
          %308 = sbr.rel (%p306) target = $region70
        $region69: #{dyhead_block.2} parent=65 // pred_region
          _
        $region70: #{dyhead_block.2} parent=65 // pred_fallthru
          _
        %s309 = sand.u32 %s47, 1
        %s310 = sand.u32 %s47, 1
        %s311 = smul.addr %s310, 128
        %s312 = scalar_lea.vmem [#allocation4], %s311
        %p313 = pneg %p60
        %p314 = pneg %p57
        %p315 = scmp.lt.s32.totalorder %s25, 1
        %s316 = scalar_select %p315, %s25, 1
        %s317 = scalar_lea.vmem %s1, %s316
        %p318 = pneg %p86
        %p319 = pneg %p83
        %p320 = pneg %p107
        %p321 = pneg %p104
        %p322 = pneg %p133
        %p323 = pneg %p130
        %p324 = scmp.lt.s32.totalorder %s23, 1
        %s325 = scalar_select %p324, %s23, 1
        %s326 = smul.addr %s325, 4
        %s327 = scalar_lea.vmem %s3, %s326
        %p328 = pneg %p163
        %p329 = pneg %p160
        %s330 = smul.u32 %s25, %s24
        %p331 = scmp.lt.s32.totalorder %s23, 1
        %s332 = scalar_select %p331, %s23, 1
        %p333 = scmp.lt.s32.totalorder %s330, 1
        %s334 = scalar_select %p333, %s330, 1
        %s335 = smul.addr %s332, 2
        %s336 = sadd.s32 %s334, %s335
        %s337 = smul.addr %s336, 4
        %s338 = scalar_lea.vmem %s4, %s337
        %s339 = smul.u32 4, %s25
        %p340 = scmp.lt.s32.totalorder %s25, 1
        %s341 = scalar_select %p340, %s25, 1
        %s342 = scalar_lea.vmem %s1, %s341
        %p343 = scmp.lt.s32.totalorder %s23, 1
        %s344 = scalar_select %p343, %s23, 1
        %s345 = smul.addr %s344, 4
        %s346 = scalar_lea.vmem %s3, %s345
        %s347 = smul.u32 %s25, %s24
        %p348 = scmp.lt.s32.totalorder %s23, 1
        %s349 = scalar_select %p348, %s23, 1
        %p350 = scmp.lt.s32.totalorder %s347, 1
        %s351 = scalar_select %p350, %s347, 1
        %s352 = smul.addr %s349, 2
        %s353 = sadd.s32 %s351, %s352
        %s354 = smul.addr %s353, 4
        %s355 = scalar_lea.vmem %s4, %s354
        %s356 = smul.u32 %s25, %s24
        %p357 = scmp.eq.s32.totalorder %s24, 0
        %p358 = scmp.eq.s32.totalorder %s25, 0
        %p359 = pnand %p357, %p358
        %p360 = pneg %p359
        // Predicated region
        $region71: #{dyhead_block.2} parent=65 // pred_check
          _
        $region72: #{dyhead_block.2} parent=65 // pred_check_branch
          %362 = sbr.rel (%p359) target = $region74
        $region73: #{dyhead_block.2} parent=65 // pred_region
          %vm363 = vcmask 125952
          %364 = vst.msk [vmem:[#allocation2] sm:$0xf] %vm363, 0.0
        $region74: #{dyhead_block.2} parent=65 // pred_fallthru
          _
        // Predicated region
        $region75: #{dyhead_block.2} parent=65 // pred_check
          %p365 = pneg %p357
        $region76: #{dyhead_block.2} parent=65 // pred_check_branch
          %367 = sbr.rel (%p365) target = $region78
        $region77: #{dyhead_block.2} parent=65 // pred_region
          %v368 = vld [vmem:[%s305] sm:$0xff]
          %v369 = vld [vmem:[%s305 + $0x8] sm:$0xff]
          %v370 = vld [vmem:[%s305 + $0x10] sm:$0xff]
          %v371 = vld [vmem:[%s305 + $0x18] sm:$0xff]
          %v372 = vld [vmem:[%s305 + $0x20] sm:$0xff]
          %v373 = vld [vmem:[%s305 + $0x28] sm:$0xff]
          %v374 = vld [vmem:[%s305 + $0x30] sm:$0xff]
          %v375 = vld [vmem:[%s305 + $0x38] sm:$0xff]
          %v376 = vld [vmem:[%s305 + $0x40] sm:$0xff]
          %v377 = vld [vmem:[%s305 + $0x48] sm:$0xff]
          %v378 = vld [vmem:[%s305 + $0x50] sm:$0xff]
          %v379 = vld [vmem:[%s305 + $0x58] sm:$0xff]
          %v380 = vld [vmem:[%s305 + $0x60] sm:$0xff]
          %v381 = vld [vmem:[%s305 + $0x68] sm:$0xff]
          %v382 = vld [vmem:[%s305 + $0x70] sm:$0xff]
          %v383 = vld [vmem:[%s305 + $0x78] sm:$0xff]
          %v384 = vld [vmem:[%s342] sm:$0x1]
          %vm385 = vcmask 261120
          %v387 = vsel %vm385, %v384, 0
          %389 = vmatprep.subr.mxu0 0.0
          %390 = vmatpush1.msra.mxu0 %v368
          %391 = vmatprep.subr.mxu0 0.0
          %392 = vmatpush1.msra.mxu0 %v369
          %393 = vmatprep.subr.mxu0 0.0
          %394 = vmatpush1.msra.mxu0 %v370
          %395 = vmatprep.subr.mxu0 0.0
          %396 = vmatpush1.msra.mxu0 %v371
          %397 = vmatprep.subr.mxu0 0.0
          %398 = vmatpush1.msra.mxu0 0.0
          %399 = vmatprep.subr.mxu0 0.0
          %400 = vmatpush1.msra.mxu0 0.0
          %401 = vmatprep.subr.mxu0 0.0
          %402 = vmatpush1.msra.mxu0 0.0
          %403 = vmatprep.subr.mxu0 0.0
          %404 = vmatpush1.msra.mxu0 0.0
          %405 = vmatprep.subr.mxu0 0.0
          %406 = vmatpush1.msra.mxu0 0.0
          %407 = vmatprep.subr.mxu0 0.0
          %408 = vmatpush1.msra.mxu0 0.0
          %409 = vmatprep.subr.mxu0 0.0
          %410 = vmatpush1.msra.mxu0 0.0
          %411 = vmatprep.subr.mxu0 0.0
          %412 = vmatpush1.msra.mxu0 0.0
          %413 = vmatprep.subr.mxu0 0.0
          %414 = vmatpush1.msra.mxu0 0.0
          %415 = vmatprep.subr.mxu0 0.0
          %416 = vmatpush1.msra.mxu0 0.0
          %417 = vmatprep.subr.mxu0 0.0
          %418 = vmatpush1.msra.mxu0 0.0
          %419 = vmatprep.subr.mxu0 0.0
          %420 = vmatpush1.msra.mxu0 0.0
          %421 = vmatprep.subr.mxu0 0.0
          %422 = vmatpush1.msra.mxu0 0.0
          %423 = vmatprep.subr.mxu0 0.0
          %424 = vmatpush1.msra.mxu0 0.0
          %425 = vmatprep.subr.mxu0 0.0
          %426 = vmatpush1.msra.mxu0 0.0
          %427 = vmatprep.subr.mxu0 0.0
          %428 = vmatpush1.msra.mxu0 0.0
          %429 = vmatprep.subr.mxu0 0.0
          %430 = vmatpush1.msra.mxu0 0.0
          %431 = vmatprep.subr.mxu0 0.0
          %432 = vmatpush1.msra.mxu0 0.0
          %433 = vmatprep.subr.mxu0 0.0
          %434 = vmatpush1.msra.mxu0 0.0
          %435 = vmatprep.subr.mxu0 0.0
          %436 = vmatpush1.msra.mxu0 0.0
          %437 = vmatprep.subr.mxu0 0.0
          %438 = vmatpush1.msra.mxu0 0.0
          %439 = vmatprep.subr.mxu0 0.0
          %440 = vmatpush1.msra.mxu0 0.0
          %441 = vmatprep.subr.mxu0 0.0
          %442 = vmatpush1.msra.mxu0 0.0
          %443 = vmatprep.subr.mxu0 0.0
          %444 = vmatpush1.msra.mxu0 0.0
          %445 = vmatprep.subr.mxu0 0.0
          %446 = vmatpush1.msra.mxu0 0.0
          %447 = vmatprep.subr.mxu0 0.0
          %448 = vmatpush1.msra.mxu0 0.0
          %449 = vmatprep.subr.mxu0 0.0
          %450 = vmatpush1.msra.mxu0 0.0
          %451 = vmatprep.subr.mxu0 0.0
          %452 = vmatpush1.msra.mxu0 0.0
          %453 = vmatprep.mubr.f32.mxu0 0.0
          %454 = vmatmul.mubr.f32.gmra.mrb[0].mxu0 %v387
          %v455 = vpop.f32.mrb[0].mxu0
          %v456 = vadd.f32 0.0, %v455
          %v457 = vpop.f32.mrb[0].mxu0
          %458 = vdwg.mxu0
          %459 = vmatprep.subr.mxu0 0.0
          %460 = vmatpush1.msra.mxu0 %v372
          %461 = vmatprep.subr.mxu0 0.0
          %462 = vmatpush1.msra.mxu0 %v373
          %463 = vmatprep.subr.mxu0 0.0
          %464 = vmatpush1.msra.mxu0 %v374
          %465 = vmatprep.subr.mxu0 0.0
          %466 = vmatpush1.msra.mxu0 %v375
          %467 = vmatprep.subr.mxu0 0.0
          %468 = vmatpush1.msra.mxu0 0.0
          %469 = vmatprep.subr.mxu0 0.0
          %470 = vmatpush1.msra.mxu0 0.0
          %471 = vmatprep.subr.mxu0 0.0
          %472 = vmatpush1.msra.mxu0 0.0
          %473 = vmatprep.subr.mxu0 0.0
          %474 = vmatpush1.msra.mxu0 0.0
          %475 = vmatprep.subr.mxu0 0.0
          %476 = vmatpush1.msra.mxu0 0.0
          %477 = vmatprep.subr.mxu0 0.0
          %478 = vmatpush1.msra.mxu0 0.0
          %479 = vmatprep.subr.mxu0 0.0
          %480 = vmatpush1.msra.mxu0 0.0
          %481 = vmatprep.subr.mxu0 0.0
          %482 = vmatpush1.msra.mxu0 0.0
          %483 = vmatprep.subr.mxu0 0.0
          %484 = vmatpush1.msra.mxu0 0.0
          %485 = vmatprep.subr.mxu0 0.0
          %486 = vmatpush1.msra.mxu0 0.0
          %487 = vmatprep.subr.mxu0 0.0
          %488 = vmatpush1.msra.mxu0 0.0
          %489 = vmatprep.subr.mxu0 0.0
          %490 = vmatpush1.msra.mxu0 0.0
          %491 = vmatprep.subr.mxu0 0.0
          %492 = vmatpush1.msra.mxu0 0.0
          %493 = vmatprep.subr.mxu0 0.0
          %494 = vmatpush1.msra.mxu0 0.0
          %495 = vmatprep.subr.mxu0 0.0
          %496 = vmatpush1.msra.mxu0 0.0
          %497 = vmatprep.subr.mxu0 0.0
          %498 = vmatpush1.msra.mxu0 0.0
          %499 = vmatprep.subr.mxu0 0.0
          %500 = vmatpush1.msra.mxu0 0.0
          %501 = vmatprep.subr.mxu0 0.0
          %502 = vmatpush1.msra.mxu0 0.0
          %503 = vmatprep.subr.mxu0 0.0
          %504 = vmatpush1.msra.mxu0 0.0
          %505 = vmatprep.subr.mxu0 0.0
          %506 = vmatpush1.msra.mxu0 0.0
          %507 = vmatprep.subr.mxu0 0.0
          %508 = vmatpush1.msra.mxu0 0.0
          %509 = vmatprep.subr.mxu0 0.0
          %510 = vmatpush1.msra.mxu0 0.0
          %511 = vmatprep.subr.mxu0 0.0
          %512 = vmatpush1.msra.mxu0 0.0
          %513 = vmatprep.subr.mxu0 0.0
          %514 = vmatpush1.msra.mxu0 0.0
          %515 = vmatprep.subr.mxu0 0.0
          %516 = vmatpush1.msra.mxu0 0.0
          %517 = vmatprep.subr.mxu0 0.0
          %518 = vmatpush1.msra.mxu0 0.0
          %519 = vmatprep.subr.mxu0 0.0
          %520 = vmatpush1.msra.mxu0 0.0
          %521 = vmatprep.subr.mxu0 0.0
          %522 = vmatpush1.msra.mxu0 0.0
          %523 = vmatprep.mubr.f32.mxu0 0.0
          %524 = vmatmul.mubr.f32.gmra.mrb[0].mxu0 %v387
          %v525 = vpop.f32.mrb[0].mxu0
          %v526 = vadd.f32 0.0, %v525
          %v527 = vpop.f32.mrb[0].mxu0
          %528 = vdwg.mxu0
          %529 = vmatprep.subr.mxu0 0.0
          %530 = vmatpush1.msra.mxu0 %v376
          %531 = vmatprep.subr.mxu0 0.0
          %532 = vmatpush1.msra.mxu0 %v377
          %533 = vmatprep.subr.mxu0 0.0
          %534 = vmatpush1.msra.mxu0 %v378
          %535 = vmatprep.subr.mxu0 0.0
          %536 = vmatpush1.msra.mxu0 %v379
          %537 = vmatprep.subr.mxu0 0.0
          %538 = vmatpush1.msra.mxu0 0.0
          %539 = vmatprep.subr.mxu0 0.0
          %540 = vmatpush1.msra.mxu0 0.0
          %541 = vmatprep.subr.mxu0 0.0
          %542 = vmatpush1.msra.mxu0 0.0
          %543 = vmatprep.subr.mxu0 0.0
          %544 = vmatpush1.msra.mxu0 0.0
          %545 = vmatprep.subr.mxu0 0.0
          %546 = vmatpush1.msra.mxu0 0.0
          %547 = vmatprep.subr.mxu0 0.0
          %548 = vmatpush1.msra.mxu0 0.0
          %549 = vmatprep.subr.mxu0 0.0
          %550 = vmatpush1.msra.mxu0 0.0
          %551 = vmatprep.subr.mxu0 0.0
          %552 = vmatpush1.msra.mxu0 0.0
          %553 = vmatprep.subr.mxu0 0.0
          %554 = vmatpush1.msra.mxu0 0.0
          %555 = vmatprep.subr.mxu0 0.0
          %556 = vmatpush1.msra.mxu0 0.0
          %557 = vmatprep.subr.mxu0 0.0
          %558 = vmatpush1.msra.mxu0 0.0
          %559 = vmatprep.subr.mxu0 0.0
          %560 = vmatpush1.msra.mxu0 0.0
          %561 = vmatprep.subr.mxu0 0.0
          %562 = vmatpush1.msra.mxu0 0.0
          %563 = vmatprep.subr.mxu0 0.0
          %564 = vmatpush1.msra.mxu0 0.0
          %565 = vmatprep.subr.mxu0 0.0
          %566 = vmatpush1.msra.mxu0 0.0
          %567 = vmatprep.subr.mxu0 0.0
          %568 = vmatpush1.msra.mxu0 0.0
          %569 = vmatprep.subr.mxu0 0.0
          %570 = vmatpush1.msra.mxu0 0.0
          %571 = vmatprep.subr.mxu0 0.0
          %572 = vmatpush1.msra.mxu0 0.0
          %573 = vmatprep.subr.mxu0 0.0
          %574 = vmatpush1.msra.mxu0 0.0
          %575 = vmatprep.subr.mxu0 0.0
          %576 = vmatpush1.msra.mxu0 0.0
          %577 = vmatprep.subr.mxu0 0.0
          %578 = vmatpush1.msra.mxu0 0.0
          %579 = vmatprep.subr.mxu0 0.0
          %580 = vmatpush1.msra.mxu0 0.0
          %581 = vmatprep.subr.mxu0 0.0
          %582 = vmatpush1.msra.mxu0 0.0
          %583 = vmatprep.subr.mxu0 0.0
          %584 = vmatpush1.msra.mxu0 0.0
          %585 = vmatprep.subr.mxu0 0.0
          %586 = vmatpush1.msra.mxu0 0.0
          %587 = vmatprep.subr.mxu0 0.0
          %588 = vmatpush1.msra.mxu0 0.0
          %589 = vmatprep.subr.mxu0 0.0
          %590 = vmatpush1.msra.mxu0 0.0
          %591 = vmatprep.subr.mxu0 0.0
          %592 = vmatpush1.msra.mxu0 0.0
          %593 = vmatprep.mubr.f32.mxu0 0.0
          %594 = vmatmul.mubr.f32.gmra.mrb[0].mxu0 %v387
          %v595 = vpop.f32.mrb[0].mxu0
          %v596 = vadd.f32 0.0, %v595
          %v597 = vpop.f32.mrb[0].mxu0
          %598 = vdwg.mxu0
          %599 = vmatprep.subr.mxu0 0.0
          %600 = vmatpush1.msra.mxu0 %v380
          %601 = vmatprep.subr.mxu0 0.0
          %602 = vmatpush1.msra.mxu0 %v381
          %603 = vmatprep.subr.mxu0 0.0
          %604 = vmatpush1.msra.mxu0 %v382
          %605 = vmatprep.subr.mxu0 0.0
          %606 = vmatpush1.msra.mxu0 %v383
          %607 = vmatprep.subr.mxu0 0.0
          %608 = vmatpush1.msra.mxu0 0.0
          %609 = vmatprep.subr.mxu0 0.0
          %610 = vmatpush1.msra.mxu0 0.0
          %611 = vmatprep.subr.mxu0 0.0
          %612 = vmatpush1.msra.mxu0 0.0
          %613 = vmatprep.subr.mxu0 0.0
          %614 = vmatpush1.msra.mxu0 0.0
          %615 = vmatprep.subr.mxu0 0.0
          %616 = vmatpush1.msra.mxu0 0.0
          %617 = vmatprep.subr.mxu0 0.0
          %618 = vmatpush1.msra.mxu0 0.0
          %619 = vmatprep.subr.mxu0 0.0
          %620 = vmatpush1.msra.mxu0 0.0
          %621 = vmatprep.subr.mxu0 0.0
          %622 = vmatpush1.msra.mxu0 0.0
          %623 = vmatprep.subr.mxu0 0.0
          %624 = vmatpush1.msra.mxu0 0.0
          %625 = vmatprep.subr.mxu0 0.0
          %626 = vmatpush1.msra.mxu0 0.0
          %627 = vmatprep.subr.mxu0 0.0
          %628 = vmatpush1.msra.mxu0 0.0
          %629 = vmatprep.subr.mxu0 0.0
          %630 = vmatpush1.msra.mxu0 0.0
          %631 = vmatprep.subr.mxu0 0.0
          %632 = vmatpush1.msra.mxu0 0.0
          %633 = vmatprep.subr.mxu0 0.0
          %634 = vmatpush1.msra.mxu0 0.0
          %635 = vmatprep.subr.mxu0 0.0
          %636 = vmatpush1.msra.mxu0 0.0
          %637 = vmatprep.subr.mxu0 0.0
          %638 = vmatpush1.msra.mxu0 0.0
          %639 = vmatprep.subr.mxu0 0.0
          %640 = vmatpush1.msra.mxu0 0.0
          %641 = vmatprep.subr.mxu0 0.0
          %642 = vmatpush1.msra.mxu0 0.0
          %643 = vmatprep.subr.mxu0 0.0
          %644 = vmatpush1.msra.mxu0 0.0
          %645 = vmatprep.subr.mxu0 0.0
          %646 = vmatpush1.msra.mxu0 0.0
          %647 = vmatprep.subr.mxu0 0.0
          %648 = vmatpush1.msra.mxu0 0.0
          %649 = vmatprep.subr.mxu0 0.0
          %650 = vmatpush1.msra.mxu0 0.0
          %651 = vmatprep.subr.mxu0 0.0
          %652 = vmatpush1.msra.mxu0 0.0
          %653 = vmatprep.subr.mxu0 0.0
          %654 = vmatpush1.msra.mxu0 0.0
          %655 = vmatprep.subr.mxu0 0.0
          %656 = vmatpush1.msra.mxu0 0.0
          %657 = vmatprep.subr.mxu0 0.0
          %658 = vmatpush1.msra.mxu0 0.0
          %659 = vmatprep.subr.mxu0 0.0
          %660 = vmatpush1.msra.mxu0 0.0
          %661 = vmatprep.subr.mxu0 0.0
          %662 = vmatpush1.msra.mxu0 0.0
          %663 = vmatprep.mubr.f32.mxu0 0.0
          %664 = vmatmul.mubr.f32.gmra.mrb[0].mxu0 %v387
          %v665 = vpop.f32.mrb[0].mxu0
          %v666 = vadd.f32 0.0, %v665
          %v667 = vpop.f32.mrb[0].mxu0
          %668 = vdwg.mxu0
          %v669 = vld [vmem:[#allocation2] sm:$0xf]
          %v671 = vrot.slane %v526, 7
          %v674 = vrot.slane %v596, 6
          %v677 = vrot.slane %v666, 5
          %vm679 = vcmask 1040384
          %v680 = vsel %vm679, %v456, %v671
          %vm681 = vcmask 1041408
          %v682 = vsel %vm681, %v680, %v674
          %vm683 = vcmask 1042432
          %v684 = vsel %vm683, %v682, %v677
          %v685 = vadd.f32 %v669, %v684
          %vm686 = vcmask 125952
          %687 = vst.msk [vmem:[#allocation2] sm:$0xf] %vm686, %v685
        $region78: #{dyhead_block.2} parent=65 // pred_fallthru
          _
        %p688 = scmp.eq.s32.totalorder %s24, 1
        %p689 = pnand %p688, %p358
        %p690 = pneg %p689
        // Predicated region
        $region79: #{dyhead_block.2} parent=65 // pred_check
          _
        $region80: #{dyhead_block.2} parent=65 // pred_check_branch
          %692 = sbr.rel (%p689) target = $region82
        $region81: #{dyhead_block.2} parent=65 // pred_region
          %v693 = vld [vmem:[#allocation2] sm:$0xf]
          %v694 = vld [vmem:[#allocation3] sm:$0x1]
          %v696 = vlaneseq
          %v697 = vshrl.u32 %v696, 7
          %v698 = vsub.s32 0, %v697
          %v699 = vrot.slane %v694, %v698
          %700 = vset.pattern.permute.xlu0 0
          %701 = vperm.xlu0 %700, %v699
          %v702 = vpop.permute.xlu0 %701
          %v704 = vadd.f32 %v693, %v702
          %v705 = vmax.f32 %v704, 0.0
          %v706 = vrcp.pop 6.0
          %v707 = vmul.f32 %v705, %v706
          %v708 = vadd.f32 %v707, 0.5
          %v709 = vmax.f32 %v708, 0.0
          %v710 = vmin.f32 %v709, 1.0
          %vm711 = vcmask 125952
          %712 = vst.msk [vmem:[#allocation2] sm:$0xf] %vm711, %v710
          %v713 = vld [vmem:[#allocation2] sm:$0xf]
          %714 = vst.msk [vmem:[%s346] sm:$0xf] %vm711, %v713
        $region82: #{dyhead_block.2} parent=65 // pred_fallthru
          _
        // Predicated region
        $region83: #{dyhead_block.2} parent=65 // pred_check
          %p715 = pneg %p688
        $region84: #{dyhead_block.2} parent=65 // pred_check_branch
          %717 = sbr.rel (%p715) target = $region86
        $region85: #{dyhead_block.2} parent=65 // pred_region
          %v718 = vld [vmem:[%s305] sm:$0xff]
          %v719 = vld [vmem:[%s305 + $0x8] sm:$0xff]
          %v720 = vld [vmem:[%s305 + $0x10] sm:$0xff]
          %v721 = vld [vmem:[%s305 + $0x18] sm:$0xff]
          %v722 = vld [vmem:[%s305 + $0x20] sm:$0xff]
          %v723 = vld [vmem:[%s305 + $0x28] sm:$0xff]
          %v724 = vld [vmem:[%s305 + $0x30] sm:$0xff]
          %v725 = vld [vmem:[%s305 + $0x38] sm:$0xff]
          %v726 = vld [vmem:[%s305 + $0x40] sm:$0xff]
          %v727 = vld [vmem:[%s305 + $0x48] sm:$0xff]
          %v728 = vld [vmem:[%s305 + $0x50] sm:$0xff]
          %v729 = vld [vmem:[%s305 + $0x58] sm:$0xff]
          %v730 = vld [vmem:[%s305 + $0x60] sm:$0xff]
          %v731 = vld [vmem:[%s305 + $0x68] sm:$0xff]
          %v732 = vld [vmem:[%s305 + $0x70] sm:$0xff]
          %v733 = vld [vmem:[%s305 + $0x78] sm:$0xff]
          %v734 = vld [vmem:[#allocation2] sm:$0xf]
          %v737 = vunpack.c.l.s4 1966171168
          %v738 = vunpack.c.0.s8 %v737
          %v739 = vlaneseq
          %v740 = vshrl.u32 %v739, 7
          %v741 = vsub.s32 %v738, %v740
          %v742 = vrot.slane %v734, %v741
          %v743 = vcombine.high %v742, %v742
          %v745 = vunpack.c.l.s4 1966171168
          %v746 = vunpack.c.0.s8 %v745
          %v747 = vlaneseq
          %v748 = vshrl.u32 %v747, 7
          %v749 = vsub.s32 %v746, %v748
          %v750 = vrot.slane %v742, %v749
          %v752 = vunpack.c.l.s4 1966171168
          %v753 = vunpack.c.0.s8 %v752
          %v754 = vlaneseq
          %v755 = vshrl.u32 %v754, 7
          %v756 = vsub.s32 %v753, %v755
          %v757 = vrot.slane %v743, %v756
          %v758 = vcombine.high %v750, %v750
          %v759 = vcombine.high %v757, %v757
          %v760 = vlaneseq
          %v761 = vshrl.u32 %v760, 7
          %v762 = vsub.s32 0, %v761
          %v763 = vrot.slane %v750, %v762
          %v764 = vlaneseq
          %v765 = vshrl.u32 %v764, 7
          %v766 = vsub.s32 0, %v765
          %v767 = vrot.slane %v757, %v766
          %v768 = vlaneseq
          %v769 = vshrl.u32 %v768, 7
          %v770 = vsub.s32 0, %v769
          %v771 = vrot.slane %v758, %v770
          %v772 = vlaneseq
          %v773 = vshrl.u32 %v772, 7
          %v774 = vsub.s32 0, %v773
          %v775 = vrot.slane %v759, %v774
          %v780 = vmul.f32 %v718, %v763
          %v781 = vmul.f32 %v719, %v763
          %v782 = vmul.f32 %v720, %v763
          %v783 = vmul.f32 %v721, %v763
          %v784 = vmul.f32 %v722, %v767
          %v785 = vmul.f32 %v723, %v767
          %v786 = vmul.f32 %v724, %v767
          %v787 = vmul.f32 %v725, %v767
          %v788 = vmul.f32 %v726, %v771
          %v789 = vmul.f32 %v727, %v771
          %v790 = vmul.f32 %v728, %v771
          %v791 = vmul.f32 %v729, %v771
          %v792 = vmul.f32 %v730, %v775
          %v793 = vmul.f32 %v731, %v775
          %v794 = vmul.f32 %v732, %v775
          %v795 = vmul.f32 %v733, %v775
          %vm796 = vcmask 130048
          %v797 = vsel %vm796, %v780, 0.0
          %798 = vadd.xlane.f32.xlu0 %v797
          %v799 = vpop.xlane.xlu0 %798
          %v800 = vsel %vm796, %v781, 0.0
          %801 = vadd.xlane.f32.xlu0 %v800
          %v802 = vpop.xlane.xlu0 %801
          %v803 = vsel %vm796, %v782, 0.0
          %804 = vadd.xlane.f32.xlu0 %v803
          %v805 = vpop.xlane.xlu0 %804
          %v806 = vsel %vm796, %v783, 0.0
          %807 = vadd.xlane.f32.xlu0 %v806
          %v808 = vpop.xlane.xlu0 %807
          %v809 = vsel %vm796, %v784, 0.0
          %810 = vadd.xlane.f32.xlu0 %v809
          %v811 = vpop.xlane.xlu0 %810
          %v812 = vsel %vm796, %v785, 0.0
          %813 = vadd.xlane.f32.xlu0 %v812
          %v814 = vpop.xlane.xlu0 %813
          %v815 = vsel %vm796, %v786, 0.0
          %816 = vadd.xlane.f32.xlu0 %v815
          %v817 = vpop.xlane.xlu0 %816
          %v818 = vsel %vm796, %v787, 0.0
          %819 = vadd.xlane.f32.xlu0 %v818
          %v820 = vpop.xlane.xlu0 %819
          %v821 = vsel %vm796, %v788, 0.0
          %822 = vadd.xlane.f32.xlu0 %v821
          %v823 = vpop.xlane.xlu0 %822
          %v824 = vsel %vm796, %v789, 0.0
          %825 = vadd.xlane.f32.xlu0 %v824
          %v826 = vpop.xlane.xlu0 %825
          %v827 = vsel %vm796, %v790, 0.0
          %828 = vadd.xlane.f32.xlu0 %v827
          %v829 = vpop.xlane.xlu0 %828
          %v830 = vsel %vm796, %v791, 0.0
          %831 = vadd.xlane.f32.xlu0 %v830
          %v832 = vpop.xlane.xlu0 %831
          %v833 = vsel %vm796, %v792, 0.0
          %834 = vadd.xlane.f32.xlu0 %v833
          %v835 = vpop.xlane.xlu0 %834
          %v836 = vsel %vm796, %v793, 0.0
          %837 = vadd.xlane.f32.xlu0 %v836
          %v838 = vpop.xlane.xlu0 %837
          %v839 = vsel %vm796, %v794, 0.0
          %840 = vadd.xlane.f32.xlu0 %v839
          %v841 = vpop.xlane.xlu0 %840
          %v842 = vsel %vm796, %v795, 0.0
          %843 = vadd.xlane.f32.xlu0 %v842
          %v844 = vpop.xlane.xlu0 %843
          %v845 = vrcp.pop 16.0
          %v846 = vmul.f32 %v799, %v845
          %v847 = vmul.f32 %v802, %v845
          %v848 = vmul.f32 %v805, %v845
          %v849 = vmul.f32 %v808, %v845
          %v850 = vmul.f32 %v811, %v845
          %v851 = vmul.f32 %v814, %v845
          %v852 = vmul.f32 %v817, %v845
          %v853 = vmul.f32 %v820, %v845
          %v854 = vmul.f32 %v823, %v845
          %v855 = vmul.f32 %v826, %v845
          %v856 = vmul.f32 %v829, %v845
          %v857 = vmul.f32 %v832, %v845
          %v858 = vmul.f32 %v835, %v845
          %v859 = vmul.f32 %v838, %v845
          %v860 = vmul.f32 %v841, %v845
          %v861 = vmul.f32 %v844, %v845
          %v878 = vlaneseq
          %v879 = vand.u32 %v878, 127
          %v880 = vlaneseq
          %v881 = vshrl.u32 %v880, 7
          %v882 = vsub.s32 %v879, %v881
          %v883 = vrot.slane %v846, %v882
          %v884 = vadd.s32 %v879, 4294967288
          %v885 = vlaneseq
          %v886 = vshrl.u32 %v885, 7
          %v887 = vsub.s32 %v884, %v886
          %v888 = vrot.slane %v847, %v887
          %vm889 = vcmask 130112
          %v890 = vsel %vm889, %v888, %v883
          %v891 = vadd.s32 %v879, 4294967280
          %v892 = vlaneseq
          %v893 = vshrl.u32 %v892, 7
          %v894 = vsub.s32 %v891, %v893
          %v895 = vrot.slane %v848, %v894
          %vm896 = vcmask 195712
          %v897 = vsel %vm896, %v895, %v890
          %v898 = vadd.s32 %v879, 4294967272
          %v899 = vlaneseq
          %v900 = vshrl.u32 %v899, 7
          %v901 = vsub.s32 %v898, %v900
          %v902 = vrot.slane %v849, %v901
          %vm903 = vcmask 261312
          %v904 = vsel %vm903, %v902, %v897
          %v905 = vlaneseq
          %v906 = vshrl.u32 %v905, 7
          %v907 = vsub.s32 %v879, %v906
          %v908 = vrot.slane %v850, %v907
          %v909 = vlaneseq
          %v910 = vshrl.u32 %v909, 7
          %v911 = vsub.s32 %v884, %v910
          %v912 = vrot.slane %v851, %v911
          %v913 = vsel %vm889, %v912, %v908
          %v914 = vlaneseq
          %v915 = vshrl.u32 %v914, 7
          %v916 = vsub.s32 %v891, %v915
          %v917 = vrot.slane %v852, %v916
          %v918 = vsel %vm896, %v917, %v913
          %v919 = vlaneseq
          %v920 = vshrl.u32 %v919, 7
          %v921 = vsub.s32 %v898, %v920
          %v922 = vrot.slane %v853, %v921
          %v923 = vsel %vm903, %v922, %v918
          %v924 = vlaneseq
          %v925 = vshrl.u32 %v924, 7
          %v926 = vsub.s32 %v879, %v925
          %v927 = vrot.slane %v854, %v926
          %v928 = vlaneseq
          %v929 = vshrl.u32 %v928, 7
          %v930 = vsub.s32 %v884, %v929
          %v931 = vrot.slane %v855, %v930
          %v932 = vsel %vm889, %v931, %v927
          %v933 = vlaneseq
          %v934 = vshrl.u32 %v933, 7
          %v935 = vsub.s32 %v891, %v934
          %v936 = vrot.slane %v856, %v935
          %v937 = vsel %vm896, %v936, %v932
          %v938 = vlaneseq
          %v939 = vshrl.u32 %v938, 7
          %v940 = vsub.s32 %v898, %v939
          %v941 = vrot.slane %v857, %v940
          %v942 = vsel %vm903, %v941, %v937
          %v943 = vlaneseq
          %v944 = vshrl.u32 %v943, 7
          %v945 = vsub.s32 %v879, %v944
          %v946 = vrot.slane %v858, %v945
          %v947 = vlaneseq
          %v948 = vshrl.u32 %v947, 7
          %v949 = vsub.s32 %v884, %v948
          %v950 = vrot.slane %v859, %v949
          %v951 = vsel %vm889, %v950, %v946
          %v952 = vlaneseq
          %v953 = vshrl.u32 %v952, 7
          %v954 = vsub.s32 %v891, %v953
          %v955 = vrot.slane %v860, %v954
          %v956 = vsel %vm896, %v955, %v951
          %v957 = vlaneseq
          %v958 = vshrl.u32 %v957, 7
          %v959 = vsub.s32 %v898, %v958
          %v960 = vrot.slane %v861, %v959
          %v961 = vsel %vm903, %v960, %v956
          %vm962 = vcmask 1041409
          %v963 = vsel %vm962, %v923, %v904
          %vm964 = vcmask 1042434
          %v965 = vsel %vm964, %v942, %v963
          %vm966 = vcmask 1043459
          %v967 = vsel %vm966, %v961, %v965
          %vm969 = vcmask 257024
          %970 = vst.msk [vmem:[%s355] sm:$0xf] %vm969, %v967
        $region86: #{dyhead_block.2} parent=65 // pred_fallthru
          _
        %p971 = scmp.lt.s32.totalorder %s23, 1
        %s972 = scalar_select %p971, %s23, 1
        %s973 = smul.addr %s972, 4
        %s974 = scalar_lea.vmem %s3, %s973
        %s975 = smul.u32 %s25, %s24
        %p976 = scmp.lt.s32.totalorder %s23, 1
        %s977 = scalar_select %p976, %s23, 1
        %p978 = scmp.lt.s32.totalorder %s975, 1
        %s979 = scalar_select %p978, %s975, 1
        %s980 = smul.addr %s977, 2
        %s981 = sadd.s32 %s979, %s980
        %s982 = smul.addr %s981, 4
        %s983 = scalar_lea.vmem %s4, %s982
        // Predicated region
        $region87: #{dyhead_block.2} parent=65 // pred_check
          %p984 = pneg %p130
        $region88: #{dyhead_block.2} parent=65 // pred_check_branch
          %986 = sbr.rel (%p984) target = $region90
        $region89: #{dyhead_block.2} parent=65 // pred_region
          _
        $region90: #{dyhead_block.2} parent=65 // pred_fallthru
          _
        // Predicated region
        $region91: #{dyhead_block.2} parent=65 // pred_check
          %p987 = pneg %p160
        $region92: #{dyhead_block.2} parent=65 // pred_check_branch
          %989 = sbr.rel (%p987) target = $region94
        $region93: #{dyhead_block.2} parent=65 // pred_region
          %s990 = smul.u32 %s25, %s24
        $region94: #{dyhead_block.2} parent=65 // pred_fallthru
          _
      $region66: #{dyhead_block.2} parent=5 // pred_fallthru
        _
      %p991 = scmp.le.s32.totalorder 2, %s13
      // Predicated region
      $region95: #{dyhead_block.2} parent=5 // pred_check
        %p992 = pneg %p991
      $region96: #{dyhead_block.2} parent=5 // pred_check_branch
        %994 = sbr.rel (%p992) target = $region98
      $region97: #{dyhead_block.2} parent=5 // pred_region
        %s995 = ssub.s32 %s13, 2
        // Predicated region
        $region99: #{dyhead_block.2} parent=97 // pred_check
          %p996 = pneg %p136
        $region100: #{dyhead_block.2} parent=97 // pred_check_branch
          %998 = sbr.rel (%p996) target = $region102
        $region101: #{dyhead_block.2} parent=97 // pred_region
          %p999 = scmp.lt.s32.totalorder %s26, 1
          %s1000 = scalar_select %p999, %s26, 1
          %s1001 = smul.addr %s1000, 4
          %s1002 = scalar_lea.vmem %s3, %s1001
        $region102: #{dyhead_block.2} parent=97 // pred_fallthru
          _
        // Predicated region
        $region103: #{dyhead_block.2} parent=97 // pred_check
          %p1003 = pneg %p166
        $region104: #{dyhead_block.2} parent=97 // pred_check_branch
          %1005 = sbr.rel (%p1003) target = $region106
        $region105: #{dyhead_block.2} parent=97 // pred_region
          %s1006 = smul.u32 %s28, %s27
          %p1007 = scmp.lt.s32.totalorder %s26, 1
          %s1008 = scalar_select %p1007, %s26, 1
          %p1009 = scmp.lt.s32.totalorder %s1006, 1
          %s1010 = scalar_select %p1009, %s1006, 1
          %s1011 = smul.addr %s1008, 2
          %s1012 = sadd.s32 %s1010, %s1011
          %s1013 = smul.addr %s1012, 4
          %s1014 = scalar_lea.vmem %s4, %s1013
        $region106: #{dyhead_block.2} parent=97 // pred_fallthru
          _
      $region98: #{dyhead_block.2} parent=5 // pred_fallthru
        _
    $region6: #{dyhead_block.2} parent=1 // loop_footer
      %s17 = sadd.s32 1, %s13
    $region7: #{dyhead_block.2} parent=1 // loop_footer_branch
      %12 = sbr.rel target = $region3
    $region8: #{dyhead_block.2} parent=1 // loop_exit
      _

// kernel: dyhead_block.3
$region0: #{dyhead_block.3}
  #allocation0 [shape = 'u32[]', space=smem, size = 0x4, offset = 0x4, fixed_abs, tag = 'smem constant byte address 0x4 - core index']
  #allocation1 [shape = 'u32[144,128]{1,0:T(1,128)}', space=vmem, size = 0x12000, scoped, tag = 'internal scratch']
  #allocation2 [shape = 'f32[1,16]{1,0:T(1,128)}', space=vmem, size = 0x200, scoped, tag = 'scratch operand']
  #allocation3 [shape = 'f32[1,64]{1,0:T(1,128)}', space=vmem, size = 0x200, scoped, tag = 'scratch operand']
  %s0 = inlined_call_operand.vmem [shape: f32[2,4,64,16], index: 0, kind: input, shape index: {}]
  %s1 = inlined_call_operand.vmem [shape: f32[2,4,16], index: 1, kind: input, shape index: {}]
  %s2 = inlined_call_operand.vmem [shape: f32[2,2,4,32], index: 2, kind: input, shape index: {}]
  %s3 = inlined_call_operand.vmem [shape: f32[16,4], index: 3, kind: input, shape index: {}]
  %s4 = inlined_call_operand.vmem [shape: f32[1,4], index: 4, kind: input, shape index: {}]
  %s5 = inlined_call_operand.vmem [shape: f32[4,64], index: 5, kind: input, shape index: {}]
  %s6 = inlined_call_operand.vmem [shape: f32[1,64], index: 6, kind: input, shape index: {}]
  %s7 = inlined_call_operand.vmem [shape: f32[2,4,64,16], index: 7, kind: output, shape index: {}]
  %s8 = sld [smem:[#allocation0]]
  $region149: #{dyhead_block.3} parent=0
    _
  %s10 = ssub.s32 1, %s8
  %s11 = scalar_select 0, %s10, %s8
  $region1: #{dyhead_block.3} parent=0
    #allocation4 [shape = 'u8[131072]{0}', space=vmem, size = 0x20000, scoped, tag = 'input window, operand 0']
    #allocation5 [shape = 'u8[131072]{0}', space=vmem, size = 0x20000, scoped, tag = 'output window, operand 0']
    loop: start=0, step=1, limit=10
    $region2: #{dyhead_block.3} parent=1 // loop_pre_header
      _
    $region3: #{dyhead_block.3} parent=1 // loop_header
      %s13 = sphi 0, %s17
      %p14 = scmp.ge.s32.totalorder %s13, 10
      %s20 = sphi 0, %s39
      %s21 = sphi 0, %s35
      %s22 = sphi 0, %s31
      %s23 = sphi 0, %s20
      %s24 = sphi 0, %s21
      %s25 = sphi 0, %s22
      %s26 = sphi 0, %s23
      %s27 = sphi 0, %s24
      %s28 = sphi 0, %s25
      %s44 = sphi 0, %s46
      %s47 = sphi 0, %s44
      %s48 = sphi 0, %s47
      %s64 = sphi 0, %s48
      %s70 = sphi 0, %s72
      %s73 = sphi 0, %s70
      %s74 = sphi 0, %s73
      %s90 = sphi 0, %s74
      %s98 = sphi 0, %s100
      %s101 = sphi 0, %s98
      %s102 = sphi 0, %s101
      %s118 = sphi 0, %s102
      %s122 = sphi 0, %s122
      %s124 = sphi 0, %s122
      %s125 = sphi 0, %s124
      %s139 = sphi 0, %s125
      %s143 = sphi 0, %s143
      %s145 = sphi 0, %s143
      %s146 = sphi 0, %s145
      %s160 = sphi 0, %s146
      %s164 = sphi 0, %s164
      %s166 = sphi 0, %s164
      %s167 = sphi 0, %s166
      %s181 = sphi 0, %s167
      %s185 = sphi 0, %s185
      %s187 = sphi 0, %s185
      %s188 = sphi 0, %s187
      %s202 = sphi 0, %s188
      %s212 = sphi 0, %s214
      %s215 = sphi 0, %s212
      %s216 = sphi 0, %s215
      %s232 = sphi 0, %s216
    $region4: #{dyhead_block.3} parent=1 // loop_header_branch
      %16 = sbr.rel (%p14) target = $region8
    $region5: #{dyhead_block.3} parent=1 // loop_body
      %s18 = ssub.s32 %s13, 1
      %s19 = ssub.s32 %s13, 2
      %s29 = sadd.s32 1, %s22
      %p30 = scmp.ge.s32.totalorder %s29, 2
      %s31 = scalar_select %p30, 0, %s29
      %s32 = sadd.s32 1, %s21
      %s33 = scalar_select %p30, %s32, %s21
      %p34 = scmp.ge.s32.totalorder %s33, 2
      %s35 = scalar_select %p34, 0, %s33
      %s36 = sadd.s32 1, %s20
      %s37 = scalar_select %p34, %s36, %s20
      %p38 = scmp.ge.s32.totalorder %s37, 2
      %s39 = scalar_select %p38, 0, %s37
      %s40 = ssub.s32 %s20, %s39
      %s41 = ssub.s32 %s22, %s31
      %s42 = sor.u32 %s40, %s41
      %p43 = scmp.eq.s32.totalorder %s42, 0
      %s45 = sadd.s32 %s44, 1
      %s46 = scalar_select %p43, %s44, %s45
      %p49 = pneg %p43
      %p50 = scmp.eq.s32.totalorder %s13, 7
      %p51 = por %p49, %p50
      %p52 = scmp.ne.s32.totalorder %s44, %s47
      %p53 = scmp.eq.s32.totalorder %s13, 0
      %p54 = por %p52, %p53
      %p55 = scmp.ne.s32.totalorder %s44, %s47
      %p56 = scmp.eq.s32.totalorder %s18, 7
      %p57 = por %p55, %p56
      %p58 = scmp.ne.s32.totalorder %s47, %s48
      %p59 = scmp.eq.s32.totalorder %s18, 0
      %p60 = por %p58, %p59
      %p61 = scmp.ne.s32.totalorder %s47, %s48
      %p62 = scmp.eq.s32.totalorder %s19, 7
      %p63 = por %p61, %p62
      %p65 = scmp.ne.s32.totalorder %s48, %s64
      %p66 = scmp.eq.s32.totalorder %s19, 0
      %p67 = por %p65, %p66
      %s68 = ssub.s32 %s20, %s39
      %p69 = scmp.eq.s32.totalorder %s68, 0
      %s71 = sadd.s32 %s70, 1
      %s72 = scalar_select %p69, %s70, %s71
      %p75 = pneg %p69
      %p76 = scmp.eq.s32.totalorder %s13, 7
      %p77 = por %p75, %p76
      %p78 = scmp.ne.s32.totalorder %s70, %s73
      %p79 = scmp.eq.s32.totalorder %s13, 0
      %p80 = por %p78, %p79
      %p81 = scmp.ne.s32.totalorder %s70, %s73
      %p82 = scmp.eq.s32.totalorder %s18, 7
      %p83 = por %p81, %p82
      %p84 = scmp.ne.s32.totalorder %s73, %s74
      %p85 = scmp.eq.s32.totalorder %s18, 0
      %p86 = por %p84, %p85
      %p87 = scmp.ne.s32.totalorder %s73, %s74
      %p88 = scmp.eq.s32.totalorder %s19, 7
      %p89 = por %p87, %p88
      %p91 = scmp.ne.s32.totalorder %s74, %s90
      %p92 = scmp.eq.s32.totalorder %s19, 0
      %p93 = por %p91, %p92
      %s94 = ssub.s32 %s20, %s39
      %s95 = ssub.s32 %s22, %s31
      %s96 = sor.u32 %s94, %s95
      %p97 = scmp.eq.s32.totalorder %s96, 0
      %s99 = sadd.s32 %s98, 1
      %s100 = scalar_select %p97, %s98, %s99
      %p103 = pneg %p97
      %p104 = scmp.eq.s32.totalorder %s13, 7
      %p105 = por %p103, %p104
      %p106 = scmp.ne.s32.totalorder %s98, %s101
      %p107 = scmp.eq.s32.totalorder %s13, 0
      %p108 = por %p106, %p107
      %p109 = scmp.ne.s32.totalorder %s98, %s101
      %p110 = scmp.eq.s32.totalorder %s18, 7
      %p111 = por %p109, %p110
      %p112 = scmp.ne.s32.totalorder %s101, %s102
      %p113 = scmp.eq.s32.totalorder %s18, 0
      %p114 = por %p112, %p113
      %p115 = scmp.ne.s32.totalorder %s101, %s102
      %p116 = scmp.eq.s32.totalorder %s19, 7
      %p117 = por %p115, %p116
      %p119 = scmp.ne.s32.totalorder %s102, %s118
      %p120 = scmp.eq.s32.totalorder %s19, 0
      %p121 = por %p119, %p120
      %s123 = sadd.s32 %s122, 1
      %p126 = scmp.eq.s32.totalorder %s13, 7
      %p127 = scmp.ne.s32.totalorder %s122, %s124
      %p128 = scmp.eq.s32.totalorder %s13, 0
      %p129 = por %p127, %p128
      %p130 = scmp.ne.s32.totalorder %s122, %s124
      %p131 = scmp.eq.s32.totalorder %s18, 7
      %p132 = por %p130, %p131
      %p133 = scmp.ne.s32.totalorder %s124, %s125
      %p134 = scmp.eq.s32.totalorder %s18, 0
      %p135 = por %p133, %p134
      %p136 = scmp.ne.s32.totalorder %s124, %s125
      %p137 = scmp.eq.s32.totalorder %s19, 7
      %p138 = por %p136, %p137
      %p140 = scmp.ne.s32.totalorder %s125, %s139
      %p141 = scmp.eq.s32.totalorder %s19, 0
      %p142 = por %p140, %p141
      %s144 = sadd.s32 %s143, 1
      %p147 = scmp.eq.s32.totalorder %s13, 7
      %p148 = scmp.ne.s32.totalorder %s143, %s145
      %p149 = scmp.eq.s32.totalorder %s13, 0
      %p150 = por %p148, %p149
      %p151 = scmp.ne.s32.totalorder %s143, %s145
      %p152 = scmp.eq.s32.totalorder %s18, 7
      %p153 = por %p151, %p152
      %p154 = scmp.ne.s32.totalorder %s145, %s146
      %p155 = scmp.eq.s32.totalorder %s18, 0
      %p156 = por %p154, %p155
      %p157 = scmp.ne.s32.totalorder %s145, %s146
      %p158 = scmp.eq.s32.totalorder %s19, 7
      %p159 = por %p157, %p158
      %p161 = scmp.ne.s32.totalorder %s146, %s160
      %p162 = scmp.eq.s32.totalorder %s19, 0
      %p163 = por %p161, %p162
      %s165 = sadd.s32 %s164, 1
      %p168 = scmp.eq.s32.totalorder %s13, 7
      %p169 = scmp.ne.s32.totalorder %s164, %s166
      %p170 = scmp.eq.s32.totalorder %s13, 0
      %p171 = por %p169, %p170
      %p172 = scmp.ne.s32.totalorder %s164, %s166
      %p173 = scmp.eq.s32.totalorder %s18, 7
      %p174 = por %p172, %p173
      %p175 = scmp.ne.s32.totalorder %s166, %s167
      %p176 = scmp.eq.s32.totalorder %s18, 0
      %p177 = por %p175, %p176
      %p178 = scmp.ne.s32.totalorder %s166, %s167
      %p179 = scmp.eq.s32.totalorder %s19, 7
      %p180 = por %p178, %p179
      %p182 = scmp.ne.s32.totalorder %s167, %s181
      %p183 = scmp.eq.s32.totalorder %s19, 0
      %p184 = por %p182, %p183
      %s186 = sadd.s32 %s185, 1
      %p189 = scmp.eq.s32.totalorder %s13, 7
      %p190 = scmp.ne.s32.totalorder %s185, %s187
      %p191 = scmp.eq.s32.totalorder %s13, 0
      %p192 = por %p190, %p191
      %p193 = scmp.ne.s32.totalorder %s185, %s187
      %p194 = scmp.eq.s32.totalorder %s18, 7
      %p195 = por %p193, %p194
      %p196 = scmp.ne.s32.totalorder %s187, %s188
      %p197 = scmp.eq.s32.totalorder %s18, 0
      %p198 = por %p196, %p197
      %p199 = scmp.ne.s32.totalorder %s187, %s188
      %p200 = scmp.eq.s32.totalorder %s19, 7
      %p201 = por %p199, %p200
      %p203 = scmp.ne.s32.totalorder %s188, %s202
      %p204 = scmp.eq.s32.totalorder %s19, 0
      %p205 = por %p203, %p204
      %s206 = smul.u32 %s22, %s21
      %s207 = smul.u32 %s31, %s35
      %s208 = ssub.s32 %s20, %s39
      %s209 = ssub.s32 %s206, %s207
      %s210 = sor.u32 %s208, %s209
      %p211 = scmp.eq.s32.totalorder %s210, 0
      %s213 = sadd.s32 %s212, 1
      %s214 = scalar_select %p211, %s212, %s213
      %p217 = pneg %p211
      %p218 = scmp.eq.s32.totalorder %s13, 7
      %p219 = por %p217, %p218
      %p220 = scmp.ne.s32.totalorder %s212, %s215
      %p221 = scmp.eq.s32.totalorder %s13, 0
      %p222 = por %p220, %p221
      %p223 = scmp.ne.s32.totalorder %s212, %s215
      %p224 = scmp.eq.s32.totalorder %s18, 7
      %p225 = por %p223, %p224
      %p226 = scmp.ne.s32.totalorder %s215, %s216
      %p227 = scmp.eq.s32.totalorder %s18, 0
      %p228 = por %p226, %p227
      %p229 = scmp.ne.s32.totalorder %s215, %s216
      %p230 = scmp.eq.s32.totalorder %s19, 7
      %p231 = por %p229, %p230
      %p233 = scmp.ne.s32.totalorder %s216, %s232
      %p234 = scmp.eq.s32.totalorder %s19, 0
      %p235 = por %p233, %p234
      %p236 = scmp.le.s32.totalorder 1, %s13
      %p237 = scmp.lt.s32.totalorder %s13, 9
      %p238 = pnand %p236, %p237
      %p239 = pneg %p238
      // Predicated region
      $region9: #{dyhead_block.3} parent=5 // pred_check
        _
      $region10: #{dyhead_block.3} parent=5 // pred_check_branch
        %241 = sbr.rel (%p238) target = $region12
      $region11: #{dyhead_block.3} parent=5 // pred_region
        %s242 = ssub.s32 %s13, 1
        // Predicated region
        $region13: #{dyhead_block.3} parent=11 // pred_check
          %p243 = pneg %p135
        $region14: #{dyhead_block.3} parent=11 // pred_check_branch
          %245 = sbr.rel (%p243) target = $region16
        $region15: #{dyhead_block.3} parent=11 // pred_region
          _
        $region16: #{dyhead_block.3} parent=11 // pred_fallthru
          _
        // Predicated region
        $region17: #{dyhead_block.3} parent=11 // pred_check
          %p246 = pneg %p156
        $region18: #{dyhead_block.3} parent=11 // pred_check_branch
          %248 = sbr.rel (%p246) target = $region20
        $region19: #{dyhead_block.3} parent=11 // pred_region
          _
        $region20: #{dyhead_block.3} parent=11 // pred_fallthru
          _
        // Predicated region
        $region21: #{dyhead_block.3} parent=11 // pred_check
          %p249 = pneg %p177
        $region22: #{dyhead_block.3} parent=11 // pred_check_branch
          %251 = sbr.rel (%p249) target = $region24
        $region23: #{dyhead_block.3} parent=11 // pred_region
          _
        $region24: #{dyhead_block.3} parent=11 // pred_fallthru
          _
        // Predicated region
        $region25: #{dyhead_block.3} parent=11 // pred_check
          %p252 = pneg %p198
        $region26: #{dyhead_block.3} parent=11 // pred_check_branch
          %254 = sbr.rel (%p252) target = $region28
        $region27: #{dyhead_block.3} parent=11 // pred_region
          _
        $region28: #{dyhead_block.3} parent=11 // pred_fallthru
          _
      $region12: #{dyhead_block.3} parent=5 // pred_fallthru
        _
      %p255 = scmp.lt.s32.totalorder %s13, 8
      // Predicated region
      $region29: #{dyhead_block.3} parent=5 // pred_check
        %p256 = pneg %p255
      $region30: #{dyhead_block.3} parent=5 // pred_check_branch
        %258 = sbr.rel (%p256) target = $region32
      $region31: #{dyhead_block.3} parent=5 // pred_region
        // Predicated region
        $region33: #{dyhead_block.3} parent=31 // pred_check
          %p259 = pneg %p54
        $region34: #{dyhead_block.3} parent=31 // pred_check_branch
          %261 = sbr.rel (%p259) target = $region36
        $region35: #{dyhead_block.3} parent=31 // pred_region
          %s262 = sand.u32 %s44, 1
          %s263 = sand.u32 %s44, 1
          %s264 = smul.addr %s263, 128
          %s265 = scalar_lea.vmem [#allocation4], %s264
          %s266 = smul.u32 4, %s22
          %s267 = smul.addr %s20, 32
          %s268 = sadd.s32 %s266, %s267
          %s269 = smul.addr %s268, 8
          %s270 = scalar_lea.vmem %s0, %s269
          // Predicated region
          $region37: #{dyhead_block.3} parent=35 // pred_check
            _
          $region38: #{dyhead_block.3} parent=35 // pred_check_branch
            %272 = sbr.rel (0) target = $region40
          $region39: #{dyhead_block.3} parent=35 // pred_region
            // Predicated region
            $region41: #{dyhead_block.3} parent=39 // pred_check
              _
            $region42: #{dyhead_block.3} parent=39 // pred_check_branch
              %274 = sbr.rel (0) target = $region44
            $region43: #{dyhead_block.3} parent=39 // pred_region
              // Predicated region
              $region56: #{dyhead_block.3} parent=43 // pred_check
                _
              $region57: #{dyhead_block.3} parent=43 // pred_check_branch
                %319 = sbr.rel (0) target = $region59
              $region58: #{dyhead_block.3} parent=43 // pred_region
                loop: start=0, step=1, limit=1
                $region60: #{dyhead_block.3} parent=58 // loop_pre_header
                  _
                $region61: #{dyhead_block.3} parent=58 // loop_header
                  %s321 = sphi 0, %s325
                  %p322 = scmp.ge.s32.totalorder %s321, 1
                  %s326 = sphi %s270, %s270
                  %s327 = sphi %s265, %s265
                $region62: #{dyhead_block.3} parent=58 // loop_header_branch
                  %324 = sbr.rel (%p322) target = $region66
                $region63: #{dyhead_block.3} parent=58 // loop_body
                  %v328 = vld [vmem:[%s326] sm:$0xff]
                  %329 = vst [vmem:[%s327] sm:$0xff] %v328
                  %v330 = vld [vmem:[%s326 + $0x8] sm:$0xff]
                  %331 = vst [vmem:[%s327 + $0x8] sm:$0xff] %v330
                  %v332 = vld [vmem:[%s326 + $0x10] sm:$0xff]
                  %333 = vst [vmem:[%s327 + $0x10] sm:$0xff] %v332
                  %v334 = vld [vmem:[%s326 + $0x18] sm:$0xff]
                  %335 = vst [vmem:[%s327 + $0x18] sm:$0xff] %v334
                  %v336 = vld [vmem:[%s326 + $0x40] sm:$0xff]
                  %337 = vst [vmem:[%s327 + $0x20] sm:$0xff] %v336
                  %v338 = vld [vmem:[%s326 + $0x48] sm:$0xff]
                  %339 = vst [vmem:[%s327 + $0x28] sm:$0xff] %v338
                  %v340 = vld [vmem:[%s326 + $0x50] sm:$0xff]
                  %341 = vst [vmem:[%s327 + $0x30] sm:$0xff] %v340
                  %v342 = vld [vmem:[%s326 + $0x58] sm:$0xff]
                  %343 = vst [vmem:[%s327 + $0x38] sm:$0xff] %v342
                  %v344 = vld [vmem:[%s326 + $0x80] sm:$0xff]
                  %345 = vst [vmem:[%s327 + $0x40] sm:$0xff] %v344
                  %v346 = vld [vmem:[%s326 + $0x88] sm:$0xff]
                  %347 = vst [vmem:[%s327 + $0x48] sm:$0xff] %v346
                  %v348 = vld [vmem:[%s326 + $0x90] sm:$0xff]
                  %349 = vst [vmem:[%s327 + $0x50] sm:$0xff] %v348
                  %v350 = vld [vmem:[%s326 + $0x98] sm:$0xff]
                  %351 = vst [vmem:[%s327 + $0x58] sm:$0xff] %v350
                  %v352 = vld [vmem:[%s326 + $0xc0] sm:$0xff]
                  %353 = vst [vmem:[%s327 + $0x60] sm:$0xff] %v352
                  %v354 = vld [vmem:[%s326 + $0xc8] sm:$0xff]
                  %355 = vst [vmem:[%s327 + $0x68] sm:$0xff] %v354
                  %v356 = vld [vmem:[%s326 + $0xd0] sm:$0xff]
                  %357 = vst [vmem:[%s327 + $0x70] sm:$0xff] %v356
                  %v358 = vld [vmem:[%s326 + $0xd8] sm:$0xff]
                  %359 = vst [vmem:[%s327 + $0x78] sm:$0xff] %v358
                $region64: #{dyhead_block.3} parent=58 // loop_footer
                  %s325 = sadd.s32 1, %s321
                $region65: #{dyhead_block.3} parent=58 // loop_footer_branch
                  %320 = sbr.rel target = $region61
                $region66: #{dyhead_block.3} parent=58 // loop_exit
                  _
              $region59: #{dyhead_block.3} parent=43 // pred_fallthru
                _
              // Predicated region
              $region67: #{dyhead_block.3} parent=43 // pred_check
                _
              $region68: #{dyhead_block.3} parent=43 // pred_check_branch
                %361 = sbr.rel target = $region70
              $region69: #{dyhead_block.3} parent=43 // pred_region
                _
              $region70: #{dyhead_block.3} parent=43 // pred_fallthru
                _
            $region44: #{dyhead_block.3} parent=39 // pred_fallthru
              _
            // Predicated region
            $region45: #{dyhead_block.3} parent=39 // pred_check
              _
            $region46: #{dyhead_block.3} parent=39 // pred_check_branch
              %276 = sbr.rel target = $region48
            $region47: #{dyhead_block.3} parent=39 // pred_region
              loop: start=0, step=1, limit=1
              $region49: #{dyhead_block.3} parent=47 // loop_pre_header
                _
              $region50: #{dyhead_block.3} parent=47 // loop_header
                %s279 = sphi 0, %s283
                %p280 = scmp.ge.s32.totalorder %s279, 1
                %s284 = sphi %s270, %s270
                %s285 = sphi %s265, %s265
              $region51: #{dyhead_block.3} parent=47 // loop_header_branch
                %282 = sbr.rel (%p280) target = $region55
              $region52: #{dyhead_block.3} parent=47 // loop_body
                %v286 = vld [vmem:[%s284] sm:$0xff]
                %287 = vst [vmem:[%s285] sm:$0xff] %v286
                %v288 = vld [vmem:[%s284 + $0x8] sm:$0xff]
                %289 = vst [vmem:[%s285 + $0x8] sm:$0xff] %v288
                %v290 = vld [vmem:[%s284 + $0x10] sm:$0xff]
                %291 = vst [vmem:[%s285 + $0x10] sm:$0xff] %v290
                %v292 = vld [vmem:[%s284 + $0x18] sm:$0xff]
                %293 = vst [vmem:[%s285 + $0x18] sm:$0xff] %v292
                %v294 = vld [vmem:[%s284 + $0x40] sm:$0xff]
                %295 = vst [vmem:[%s285 + $0x20] sm:$0xff] %v294
                %v296 = vld [vmem:[%s284 + $0x48] sm:$0xff]
                %297 = vst [vmem:[%s285 + $0x28] sm:$0xff] %v296
                %v298 = vld [vmem:[%s284 + $0x50] sm:$0xff]
                %299 = vst [vmem:[%s285 + $0x30] sm:$0xff] %v298
                %v300 = vld [vmem:[%s284 + $0x58] sm:$0xff]
                %301 = vst [vmem:[%s285 + $0x38] sm:$0xff] %v300
                %v302 = vld [vmem:[%s284 + $0x80] sm:$0xff]
                %303 = vst [vmem:[%s285 + $0x40] sm:$0xff] %v302
                %v304 = vld [vmem:[%s284 + $0x88] sm:$0xff]
                %305 = vst [vmem:[%s285 + $0x48] sm:$0xff] %v304
                %v306 = vld [vmem:[%s284 + $0x90] sm:$0xff]
                %307 = vst [vmem:[%s285 + $0x50] sm:$0xff] %v306
                %v308 = vld [vmem:[%s284 + $0x98] sm:$0xff]
                %309 = vst [vmem:[%s285 + $0x58] sm:$0xff] %v308
                %v310 = vld [vmem:[%s284 + $0xc0] sm:$0xff]
                %311 = vst [vmem:[%s285 + $0x60] sm:$0xff] %v310
                %v312 = vld [vmem:[%s284 + $0xc8] sm:$0xff]
                %313 = vst [vmem:[%s285 + $0x68] sm:$0xff] %v312
                %v314 = vld [vmem:[%s284 + $0xd0] sm:$0xff]
                %315 = vst [vmem:[%s285 + $0x70] sm:$0xff] %v314
                %v316 = vld [vmem:[%s284 + $0xd8] sm:$0xff]
                %317 = vst [vmem:[%s285 + $0x78] sm:$0xff] %v316
              $region53: #{dyhead_block.3} parent=47 // loop_footer
                %s283 = sadd.s32 1, %s279
              $region54: #{dyhead_block.3} parent=47 // loop_footer_branch
                %278 = sbr.rel target = $region50
              $region55: #{dyhead_block.3} parent=47 // loop_exit
                _
            $region48: #{dyhead_block.3} parent=39 // pred_fallthru
              _
          $region40: #{dyhead_block.3} parent=35 // pred_fallthru
            _
          %362 = vnop
        $region36: #{dyhead_block.3} parent=31 // pred_fallthru
          _
        // Predicated region
        $region71: #{dyhead_block.3} parent=31 // pred_check
          %p363 = pneg %p80
        $region72: #{dyhead_block.3} parent=31 // pred_check_branch
          %365 = sbr.rel (%p363) target = $region74
        $region73: #{dyhead_block.3} parent=31 // pred_region
          %p366 = scmp.lt.s32.totalorder %s20, 1
          %s367 = scalar_select %p366, %s20, 1
          %s368 = smul.addr %s367, 4
          %s369 = scalar_lea.vmem %s1, %s368
        $region74: #{dyhead_block.3} parent=31 // pred_fallthru
          _
        // Predicated region
        $region75: #{dyhead_block.3} parent=31 // pred_check
          %p370 = pneg %p108
        $region76: #{dyhead_block.3} parent=31 // pred_check_branch
          %372 = sbr.rel (%p370) target = $region78
        $region77: #{dyhead_block.3} parent=31 // pred_region
          %p373 = scmp.lt.s32.totalorder %s20, 1
          %s374 = scalar_select %p373, %s20, 1
          %p375 = scmp.lt.s32.totalorder %s22, 1
          %s376 = scalar_select %p375, %s22, 1
          %s377 = smul.addr %s374, 2
          %s378 = sadd.s32 %s376, %s377
          %s379 = smul.addr %s378, 4
          %s380 = scalar_lea.vmem %s2, %s379
        $region78: #{dyhead_block.3} parent=31 // pred_fallthru
          _
      $region32: #{dyhead_block.3} parent=5 // pred_fallthru
        _
      %p381 = scmp.le.s32.totalorder 1, %s13
      %p382 = scmp.lt.s32.totalorder %s13, 9
      %p383 = pnand %p381, %p382
      %p384 = pneg %p383
      // Predicated region
      $region79: #{dyhead_block.3} parent=5 // pred_check
        _
      $region80: #{dyhead_block.3} parent=5 // pred_check_branch
        %386 = sbr.rel (%p383) target = $region82
      $region81: #{dyhead_block.3} parent=5 // pred_region
        %s387 = ssub.s32 %s13, 1
        %s388 = sand.u32 %s47, 1
        %s389 = sand.u32 %s47, 1
        %s390 = smul.addr %s389, 128
        %s391 = scalar_lea.vmem [#allocation4], %s390
        // Predicated region
        $region83: #{dyhead_block.3} parent=81 // pred_check
          %p392 = pneg %p60
        $region84: #{dyhead_block.3} parent=81 // pred_check_branch
          %394 = sbr.rel (%p392) target = $region86
        $region85: #{dyhead_block.3} parent=81 // pred_region
          _
        $region86: #{dyhead_block.3} parent=81 // pred_fallthru
          _
        %s395 = sand.u32 %s47, 1
        %s396 = sand.u32 %s47, 1
        %s397 = smul.addr %s396, 128
        %s398 = scalar_lea.vmem [#allocation4], %s397
        %p399 = pneg %p60
        %p400 = pneg %p57
        %p401 = scmp.lt.s32.totalorder %s23, 1
        %s402 = scalar_select %p401, %s23, 1
        %s403 = smul.addr %s402, 4
        %s404 = scalar_lea.vmem %s1, %s403
        %p405 = pneg %p86
        %p406 = pneg %p83
        %p407 = scmp.lt.s32.totalorder %s23, 1
        %s408 = scalar_select %p407, %s23, 1
        %p409 = scmp.lt.s32.totalorder %s25, 1
        %s410 = scalar_select %p409, %s25, 1
        %s411 = smul.addr %s408, 2
        %s412 = sadd.s32 %s410, %s411
        %s413 = smul.addr %s412, 4
        %s414 = scalar_lea.vmem %s2, %s413
        %p415 = pneg %p114
        %p416 = pneg %p111
        %p417 = pneg %p135
        %p418 = pneg %p132
        %p419 = pneg %p156
        %p420 = pneg %p153
        %p421 = pneg %p177
        %p422 = pneg %p174
        %p423 = pneg %p198
        %p424 = pneg %p195
        %p425 = pneg %p228
        %p426 = pneg %p225
        %s427 = sand.u32 %s215, 1
        %s428 = sand.u32 %s215, 1
        %s429 = smul.addr %s428, 128
        %s430 = scalar_lea.vmem [#allocation5], %s429
        %s431 = smul.u32 4, %s25
        %p432 = scmp.lt.s32.totalorder %s23, 1
        %s433 = scalar_select %p432, %s23, 1
        %s434 = smul.addr %s433, 4
        %s435 = scalar_lea.vmem %s1, %s434
        %p436 = scmp.lt.s32.totalorder %s23, 1
        %s437 = scalar_select %p436, %s23, 1
        %p438 = scmp.lt.s32.totalorder %s25, 1
        %s439 = scalar_select %p438, %s25, 1
        %s440 = smul.addr %s437, 2
        %s441 = sadd.s32 %s439, %s440
        %s442 = smul.addr %s441, 4
        %s443 = scalar_lea.vmem %s2, %s442
        %s444 = smul.u32 %s25, %s24
        %s445 = smul.u32 4, %s444
        %p446 = scmp.eq.s32.totalorder %s24, 0
        %p447 = scmp.eq.s32.totalorder %s25, 0
        %p448 = pnand %p446, %p447
        %p449 = pneg %p448
        // Predicated region
        $region87: #{dyhead_block.3} parent=81 // pred_check
          _
        $region88: #{dyhead_block.3} parent=81 // pred_check_branch
          %451 = sbr.rel (%p448) target = $region90
        $region89: #{dyhead_block.3} parent=81 // pred_region
          %vm452 = vcmask 122880
          %453 = vst.msk [vmem:[#allocation2] sm:$0x1] %vm452, 0.0
        $region90: #{dyhead_block.3} parent=81 // pred_fallthru
          _
        // Predicated region
        $region91: #{dyhead_block.3} parent=81 // pred_check
          %p454 = pneg %p446
        $region92: #{dyhead_block.3} parent=81 // pred_check_branch
          %456 = sbr.rel (%p454) target = $region94
        $region93: #{dyhead_block.3} parent=81 // pred_region
          %v457 = vld [vmem:[%s391] sm:$0xff]
          %v458 = vld [vmem:[%s391 + $0x8] sm:$0xff]
          %v459 = vld [vmem:[%s391 + $0x10] sm:$0xff]
          %v460 = vld [vmem:[%s391 + $0x18] sm:$0xff]
          %v461 = vld [vmem:[%s391 + $0x20] sm:$0xff]
          %v462 = vld [vmem:[%s391 + $0x28] sm:$0xff]
          %v463 = vld [vmem:[%s391 + $0x30] sm:$0xff]
          %v464 = vld [vmem:[%s391 + $0x38] sm:$0xff]
          %v465 = vld [vmem:[%s391 + $0x40] sm:$0xff]
          %v466 = vld [vmem:[%s391 + $0x48] sm:$0xff]
          %v467 = vld [vmem:[%s391 + $0x50] sm:$0xff]
          %v468 = vld [vmem:[%s391 + $0x58] sm:$0xff]
          %v469 = vld [vmem:[%s391 + $0x60] sm:$0xff]
          %v470 = vld [vmem:[%s391 + $0x68] sm:$0xff]
          %v471 = vld [vmem:[%s391 + $0x70] sm:$0xff]
          %v472 = vld [vmem:[%s391 + $0x78] sm:$0xff]
          %v473 = vld [vmem:[%s435] sm:$0xf]
          %v476 = vunpack.c.l.s4 1966171168
          %v477 = vunpack.c.0.s8 %v476
          %v478 = vlaneseq
          %v479 = vshrl.u32 %v478, 7
          %v480 = vsub.s32 %v477, %v479
          %v481 = vrot.slane %v473, %v480
          %v482 = vcombine.high %v481, %v481
          %v484 = vunpack.c.l.s4 1966171168
          %v485 = vunpack.c.0.s8 %v484
          %v486 = vlaneseq
          %v487 = vshrl.u32 %v486, 7
          %v488 = vsub.s32 %v485, %v487
          %v489 = vrot.slane %v481, %v488
          %v491 = vunpack.c.l.s4 1966171168
          %v492 = vunpack.c.0.s8 %v491
          %v493 = vlaneseq
          %v494 = vshrl.u32 %v493, 7
          %v495 = vsub.s32 %v492, %v494
          %v496 = vrot.slane %v482, %v495
          %v497 = vcombine.high %v489, %v489
          %v498 = vcombine.high %v496, %v496
          %v499 = vlaneseq
          %v500 = vshrl.u32 %v499, 7
          %v501 = vsub.s32 0, %v500
          %v502 = vrot.slane %v489, %v501
          %v503 = vlaneseq
          %v504 = vshrl.u32 %v503, 7
          %v505 = vsub.s32 0, %v504
          %v506 = vrot.slane %v496, %v505
          %v507 = vlaneseq
          %v508 = vshrl.u32 %v507, 7
          %v509 = vsub.s32 0, %v508
          %v510 = vrot.slane %v497, %v509
          %v511 = vlaneseq
          %v512 = vshrl.u32 %v511, 7
          %v513 = vsub.s32 0, %v512
          %v514 = vrot.slane %v498, %v513
          %v519 = vmul.f32 %v457, %v502
          %v520 = vmul.f32 %v458, %v502
          %v521 = vmul.f32 %v459, %v502
          %v522 = vmul.f32 %v460, %v502
          %v523 = vmul.f32 %v461, %v506
          %v524 = vmul.f32 %v462, %v506
          %v525 = vmul.f32 %v463, %v506
          %v526 = vmul.f32 %v464, %v506
          %v527 = vmul.f32 %v465, %v510
          %v528 = vmul.f32 %v466, %v510
          %v529 = vmul.f32 %v467, %v510
          %v530 = vmul.f32 %v468, %v510
          %v531 = vmul.f32 %v469, %v514
          %v532 = vmul.f32 %v470, %v514
          %v533 = vmul.f32 %v471, %v514
          %v534 = vmul.f32 %v472, %v514
          %v535 = vld [vmem:[%s443] sm:$0xf]
          %v536 = vlaneseq
          %v537 = vshrl.u32 %v536, 7
          %v538 = vsub.s32 0, %v537
          %v539 = vrot.slane %v535, %v538
          %541 = vbcast.lane.b32.xlu0 %v539, 256
          %v542 = vpop.permute.xlu0 %541
          %s544 = sor.u32 256, 8
          %545 = vbcast.lane.b32.xlu0 %v539, %s544
          %v546 = vpop.permute.xlu0 %545
          %s548 = sor.u32 256, 16
          %549 = vbcast.lane.b32.xlu0 %v539, %s548
          %v550 = vpop.permute.xlu0 %549
          %s552 = sor.u32 256, 24
          %553 = vbcast.lane.b32.xlu0 %v539, %s552
          %v554 = vpop.permute.xlu0 %553
          %v555 = vlaneseq
          %v556 = vshrl.u32 %v555, 7
          %v557 = vsub.s32 1, %v556
          %v558 = vrot.slane %v535, %v557
          %560 = vbcast.lane.b32.xlu0 %v558, 256
          %v561 = vpop.permute.xlu0 %560
          %s563 = sor.u32 256, 8
          %564 = vbcast.lane.b32.xlu0 %v558, %s563
          %v565 = vpop.permute.xlu0 %564
          %s567 = sor.u32 256, 16
          %568 = vbcast.lane.b32.xlu0 %v558, %s567
          %v569 = vpop.permute.xlu0 %568
          %s571 = sor.u32 256, 24
          %572 = vbcast.lane.b32.xlu0 %v558, %s571
          %v573 = vpop.permute.xlu0 %572
          %v574 = vlaneseq
          %v575 = vshrl.u32 %v574, 7
          %v576 = vsub.s32 2, %v575
          %v577 = vrot.slane %v535, %v576
          %579 = vbcast.lane.b32.xlu0 %v577, 256
          %v580 = vpop.permute.xlu0 %579
          %s582 = sor.u32 256, 8
          %583 = vbcast.lane.b32.xlu0 %v577, %s582
          %v584 = vpop.permute.xlu0 %583
          %s586 = sor.u32 256, 16
          %587 = vbcast.lane.b32.xlu0 %v577, %s586
          %v588 = vpop.permute.xlu0 %587
          %s590 = sor.u32 256, 24
          %591 = vbcast.lane.b32.xlu0 %v577, %s590
          %v592 = vpop.permute.xlu0 %591
          %v593 = vlaneseq
          %v594 = vshrl.u32 %v593, 7
          %v595 = vsub.s32 3, %v594
          %v596 = vrot.slane %v535, %v595
          %598 = vbcast.lane.b32.xlu0 %v596, 256
          %v599 = vpop.permute.xlu0 %598
          %s601 = sor.u32 256, 8
          %602 = vbcast.lane.b32.xlu0 %v596, %s601
          %v603 = vpop.permute.xlu0 %602
          %s605 = sor.u32 256, 16
          %606 = vbcast.lane.b32.xlu0 %v596, %s605
          %v607 = vpop.permute.xlu0 %606
          %s609 = sor.u32 256, 24
          %610 = vbcast.lane.b32.xlu0 %v596, %s609
          %v611 = vpop.permute.xlu0 %610
          %v612 = vmul.f32 %v519, %v542
          %v613 = vmul.f32 %v520, %v546
          %v614 = vmul.f32 %v521, %v550
          %v615 = vmul.f32 %v522, %v554
          %v616 = vmul.f32 %v523, %v561
          %v617 = vmul.f32 %v524, %v565
          %v618 = vmul.f32 %v525, %v569
          %v619 = vmul.f32 %v526, %v573
          %v620 = vmul.f32 %v527, %v580
          %v621 = vmul.f32 %v528, %v584
          %v622 = vmul.f32 %v529, %v588
          %v623 = vmul.f32 %v530, %v592
          %v624 = vmul.f32 %v531, %v599
          %v625 = vmul.f32 %v532, %v603
          %v626 = vmul.f32 %v533, %v607
          %v627 = vmul.f32 %v534, %v611
          %vm628 = vcmask 130048
          %v629 = vsel %vm628, %v612, 0.0
          %v630 = vsel %vm628, %v616, 0.0
          %v631 = vadd.f32 %v629, %v630
          %v632 = vsel %vm628, %v620, 0.0
          %v633 = vadd.f32 %v631, %v632
          %v634 = vsel %vm628, %v624, 0.0
          %v635 = vadd.f32 %v633, %v634
          %v636 = vsel %vm628, %v613, 0.0
          %v637 = vsel %vm628, %v617, 0.0
          %v638 = vadd.f32 %v636, %v637
          %v639 = vsel %vm628, %v621, 0.0
          %v640 = vadd.f32 %v638, %v639
          %v641 = vsel %vm628, %v625, 0.0
          %v642 = vadd.f32 %v640, %v641
          %v643 = vsel %vm628, %v614, 0.0
          %v644 = vsel %vm628, %v618, 0.0
          %v645 = vadd.f32 %v643, %v644
          %v646 = vsel %vm628, %v622, 0.0
          %v647 = vadd.f32 %v645, %v646
          %v648 = vsel %vm628, %v626, 0.0
          %v649 = vadd.f32 %v647, %v648
          %v650 = vsel %vm628, %v615, 0.0
          %v651 = vsel %vm628, %v619, 0.0
          %v652 = vadd.f32 %v650, %v651
          %v653 = vsel %vm628, %v623, 0.0
          %v654 = vadd.f32 %v652, %v653
          %v655 = vsel %vm628, %v627, 0.0
          %v656 = vadd.f32 %v654, %v655
          %v657 = vld [vmem:[#allocation2] sm:$0x1]
          %v658 = vsel %vm628, %v635, 0.0
          %v659 = vsel %vm628, %v642, 0.0
          %v660 = vadd.f32 %v658, %v659
          %v661 = vsel %vm628, %v649, 0.0
          %v662 = vadd.f32 %v660, %v661
          %v663 = vsel %vm628, %v656, 0.0
          %v664 = vadd.f32 %v662, %v663
          %v665 = vrot.slane %v664, 4
          %v666 = vadd.f32 %v664, %v665
          %v667 = vrot.slane %v666, 2
          %v668 = vadd.f32 %v666, %v667
          %v669 = vrot.slane %v668, 1
          %v670 = vadd.f32 %v668, %v669
          %v671 = vadd.f32 %v657, %v670
          %vm672 = vcmask 122880
          %673 = vst.msk [vmem:[#allocation2] sm:$0x1] %vm672, %v671
        $region94: #{dyhead_block.3} parent=81 // pred_fallthru
          _
        %p674 = scmp.eq.s32.totalorder %s24, 1
        %p675 = pnand %p674, %p447
        %p676 = pneg %p675
        // Predicated region
        $region95: #{dyhead_block.3} parent=81 // pred_check
          _
        $region96: #{dyhead_block.3} parent=81 // pred_check_branch
          %678 = sbr.rel (%p675) target = $region98
        $region97: #{dyhead_block.3} parent=81 // pred_region
          %v679 = vld [vmem:[#allocation2] sm:$0x1]
          %v680 = vmul.f32 %v679, 0.00390625
          %v681 = vld [vmem:[%s3] sm:$0xff]
          %v682 = vld [vmem:[%s3 + $0x8] sm:$0xff]
          %v683 = vld [vmem:[%s4] sm:$0x1]
          %vm684 = vcmask 130048
          %v686 = vsel %vm684, %v680, 0
          %688 = vmatprep.subr.mxu0 0.0
          %689 = vmatpush1.msra.mxu0 %v681
          %690 = vmatprep.subr.mxu0 0.0
          %691 = vmatpush1.msra.mxu0 %v682
          %692 = vmatprep.subr.mxu0 0.0
          %693 = vmatpush1.msra.mxu0 0.0
          %694 = vmatprep.subr.mxu0 0.0
          %695 = vmatpush1.msra.mxu0 0.0
          %696 = vmatprep.subr.mxu0 0.0
          %697 = vmatpush1.msra.mxu0 0.0
          %698 = vmatprep.subr.mxu0 0.0
          %699 = vmatpush1.msra.mxu0 0.0
          %700 = vmatprep.subr.mxu0 0.0
          %701 = vmatpush1.msra.mxu0 0.0
          %702 = vmatprep.subr.mxu0 0.0
          %703 = vmatpush1.msra.mxu0 0.0
          %704 = vmatprep.subr.mxu0 0.0
          %705 = vmatpush1.msra.mxu0 0.0
          %706 = vmatprep.subr.mxu0 0.0
          %707 = vmatpush1.msra.mxu0 0.0
          %708 = vmatprep.subr.mxu0 0.0
          %709 = vmatpush1.msra.mxu0 0.0
          %710 = vmatprep.subr.mxu0 0.0
          %711 = vmatpush1.msra.mxu0 0.0
          %712 = vmatprep.subr.mxu0 0.0
          %713 = vmatpush1.msra.mxu0 0.0
          %714 = vmatprep.subr.mxu0 0.0
          %715 = vmatpush1.msra.mxu0 0.0
          %716 = vmatprep.subr.mxu0 0.0
          %717 = vmatpush1.msra.mxu0 0.0
          %718 = vmatprep.subr.mxu0 0.0
          %719 = vmatpush1.msra.mxu0 0.0
          %720 = vmatprep.subr.mxu0 0.0
          %721 = vmatpush1.msra.mxu0 0.0
          %722 = vmatprep.subr.mxu0 0.0
          %723 = vmatpush1.msra.mxu0 0.0
          %724 = vmatprep.subr.mxu0 0.0
          %725 = vmatpush1.msra.mxu0 0.0
          %726 = vmatprep.subr.mxu0 0.0
          %727 = vmatpush1.msra.mxu0 0.0
          %728 = vmatprep.subr.mxu0 0.0
          %729 = vmatpush1.msra.mxu0 0.0
          %730 = vmatprep.subr.mxu0 0.0
          %731 = vmatpush1.msra.mxu0 0.0
          %732 = vmatprep.subr.mxu0 0.0
          %733 = vmatpush1.msra.mxu0 0.0
          %734 = vmatprep.subr.mxu0 0.0
          %735 = vmatpush1.msra.mxu0 0.0
          %736 = vmatprep.subr.mxu0 0.0
          %737 = vmatpush1.msra.mxu0 0.0
          %738 = vmatprep.subr.mxu0 0.0
          %739 = vmatpush1.msra.mxu0 0.0
          %740 = vmatprep.subr.mxu0 0.0
          %741 = vmatpush1.msra.mxu0 0.0
          %742 = vmatprep.subr.mxu0 0.0
          %743 = vmatpush1.msra.mxu0 0.0
          %744 = vmatprep.subr.mxu0 0.0
          %745 = vmatpush1.msra.mxu0 0.0
          %746 = vmatprep.subr.mxu0 0.0
          %747 = vmatpush1.msra.mxu0 0.0
          %748 = vmatprep.subr.mxu0 0.0
          %749 = vmatpush1.msra.mxu0 0.0
          %750 = vmatprep.subr.mxu0 0.0
          %751 = vmatpush1.msra.mxu0 0.0
          %752 = vmatprep.mubr.f32.mxu0 0.0
          %753 = vmatmul.mubr.f32.gmra.mrb[0].mxu0 %v686
          %v754 = vpop.f32.mrb[0].mxu0
          %v755 = vadd.f32 %v683, %v754
          %v756 = vpop.f32.mrb[0].mxu0
          %757 = vdwg.mxu0
          %v758 = vmax.f32 %v755, 0.0
          %v759 = vld [vmem:[%s5] sm:$0xf]
          %v760 = vld [vmem:[%s6] sm:$0x1]
          %vm761 = vcmask 31744
          %v763 = vsel %vm761, %v758, 0
          %vm765 = vcmask 1043456
          %v767 = vsel %vm765, %v759, 0
          %769 = vmatprep.subr.mxu0 0.0
          %770 = vmatpush1.msra.mxu0 %v767
          %771 = vmatprep.subr.mxu0 0.0
          %772 = vmatpush1.msra.mxu0 0.0
          %773 = vmatprep.subr.mxu0 0.0
          %774 = vmatpush1.msra.mxu0 0.0
          %775 = vmatprep.subr.mxu0 0.0
          %776 = vmatpush1.msra.mxu0 0.0
          %777 = vmatprep.subr.mxu0 0.0
          %778 = vmatpush1.msra.mxu0 0.0
          %779 = vmatprep.subr.mxu0 0.0
          %780 = vmatpush1.msra.mxu0 0.0
          %781 = vmatprep.subr.mxu0 0.0
          %782 = vmatpush1.msra.mxu0 0.0
          %783 = vmatprep.subr.mxu0 0.0
          %784 = vmatpush1.msra.mxu0 0.0
          %785 = vmatprep.subr.mxu0 0.0
          %786 = vmatpush1.msra.mxu0 0.0
          %787 = vmatprep.subr.mxu0 0.0
          %788 = vmatpush1.msra.mxu0 0.0
          %789 = vmatprep.subr.mxu0 0.0
          %790 = vmatpush1.msra.mxu0 0.0
          %791 = vmatprep.subr.mxu0 0.0
          %792 = vmatpush1.msra.mxu0 0.0
          %793 = vmatprep.subr.mxu0 0.0
          %794 = vmatpush1.msra.mxu0 0.0
          %795 = vmatprep.subr.mxu0 0.0
          %796 = vmatpush1.msra.mxu0 0.0
          %797 = vmatprep.subr.mxu0 0.0
          %798 = vmatpush1.msra.mxu0 0.0
          %799 = vmatprep.subr.mxu0 0.0
          %800 = vmatpush1.msra.mxu0 0.0
          %801 = vmatprep.subr.mxu0 0.0
          %802 = vmatpush1.msra.mxu0 0.0
          %803 = vmatprep.subr.mxu0 0.0
          %804 = vmatpush1.msra.mxu0 0.0
          %805 = vmatprep.subr.mxu0 0.0
          %806 = vmatpush1.msra.mxu0 0.0
          %807 = vmatprep.subr.mxu0 0.0
          %808 = vmatpush1.msra.mxu0 0.0
          %809 = vmatprep.subr.mxu0 0.0
          %810 = vmatpush1.msra.mxu0 0.0
          %811 = vmatprep.subr.mxu0 0.0
          %812 = vmatpush1.msra.mxu0 0.0
          %813 = vmatprep.subr.mxu0 0.0
          %814 = vmatpush1.msra.mxu0 0.0
          %815 = vmatprep.subr.mxu0 0.0
          %816 = vmatpush1.msra.mxu0 0.0
          %817 = vmatprep.subr.mxu0 0.0
          %818 = vmatpush1.msra.mxu0 0.0
          %819 = vmatprep.subr.mxu0 0.0
          %820 = vmatpush1.msra.mxu0 0.0
          %821 = vmatprep.subr.mxu0 0.0
          %822 = vmatpush1.msra.mxu0 0.0
          %823 = vmatprep.subr.mxu0 0.0
          %824 = vmatpush1.msra.mxu0 0.0
          %825 = vmatprep.subr.mxu0 0.0
          %826 = vmatpush1.msra.mxu0 0.0
          %827 = vmatprep.subr.mxu0 0.0
          %828 = vmatpush1.msra.mxu0 0.0
          %829 = vmatprep.subr.mxu0 0.0
          %830 = vmatpush1.msra.mxu0 0.0
          %831 = vmatprep.subr.mxu0 0.0
          %832 = vmatpush1.msra.mxu0 0.0
          %833 = vmatprep.mubr.f32.mxu0 0.0
          %834 = vmatmul.mubr.f32.gmra.mrb[0].mxu0 %v763
          %v835 = vpop.f32.mrb[0].mxu0
          %v836 = vadd.f32 %v760, %v835
          %v837 = vpop.f32.mrb[0].mxu0
          %838 = vdwg.mxu0
          %v839 = vxor.u32 %v836, 2147483648
          %v840 = vmul.f32 %v839, 1.442695
          %v841 = vpow.pop %v840
          %v842 = vadd.f32 %v841, 1.0
          %v843 = vrcp.pop %v842
          %v844 = vmul.f32 1.0, %v843
          %v845 = vmul.f32 %v844, 2.0
          %v846 = vsub.f32 %v845, 1.0
          %vm847 = vcmask 516096
          %848 = vst.msk [vmem:[#allocation3] sm:$0x1] %vm847, %v846
        $region98: #{dyhead_block.3} parent=81 // pred_fallthru
          _
        // Predicated region
        $region99: #{dyhead_block.3} parent=81 // pred_check
          %p849 = pneg %p674
        $region100: #{dyhead_block.3} parent=81 // pred_check_branch
          %851 = sbr.rel (%p849) target = $region102
        $region101: #{dyhead_block.3} parent=81 // pred_region
          %v852 = vld [vmem:[%s391] sm:$0xff]
          %v853 = vld [vmem:[%s391 + $0x8] sm:$0xff]
          %v854 = vld [vmem:[%s391 + $0x10] sm:$0xff]
          %v855 = vld [vmem:[%s391 + $0x18] sm:$0xff]
          %v856 = vld [vmem:[%s391 + $0x20] sm:$0xff]
          %v857 = vld [vmem:[%s391 + $0x28] sm:$0xff]
          %v858 = vld [vmem:[%s391 + $0x30] sm:$0xff]
          %v859 = vld [vmem:[%s391 + $0x38] sm:$0xff]
          %v860 = vld [vmem:[%s391 + $0x40] sm:$0xff]
          %v861 = vld [vmem:[%s391 + $0x48] sm:$0xff]
          %v862 = vld [vmem:[%s391 + $0x50] sm:$0xff]
          %v863 = vld [vmem:[%s391 + $0x58] sm:$0xff]
          %v864 = vld [vmem:[%s391 + $0x60] sm:$0xff]
          %v865 = vld [vmem:[%s391 + $0x68] sm:$0xff]
          %v866 = vld [vmem:[%s391 + $0x70] sm:$0xff]
          %v867 = vld [vmem:[%s391 + $0x78] sm:$0xff]
          %v868 = vld [vmem:[%s435] sm:$0xf]
          %v871 = vunpack.c.l.s4 1966171168
          %v872 = vunpack.c.0.s8 %v871
          %v873 = vlaneseq
          %v874 = vshrl.u32 %v873, 7
          %v875 = vsub.s32 %v872, %v874
          %v876 = vrot.slane %v868, %v875
          %v877 = vcombine.high %v876, %v876
          %v879 = vunpack.c.l.s4 1966171168
          %v880 = vunpack.c.0.s8 %v879
          %v881 = vlaneseq
          %v882 = vshrl.u32 %v881, 7
          %v883 = vsub.s32 %v880, %v882
          %v884 = vrot.slane %v876, %v883
          %v886 = vunpack.c.l.s4 1966171168
          %v887 = vunpack.c.0.s8 %v886
          %v888 = vlaneseq
          %v889 = vshrl.u32 %v888, 7
          %v890 = vsub.s32 %v887, %v889
          %v891 = vrot.slane %v877, %v890
          %v892 = vcombine.high %v884, %v884
          %v893 = vcombine.high %v891, %v891
          %v894 = vlaneseq
          %v895 = vshrl.u32 %v894, 7
          %v896 = vsub.s32 0, %v895
          %v897 = vrot.slane %v884, %v896
          %v898 = vlaneseq
          %v899 = vshrl.u32 %v898, 7
          %v900 = vsub.s32 0, %v899
          %v901 = vrot.slane %v891, %v900
          %v902 = vlaneseq
          %v903 = vshrl.u32 %v902, 7
          %v904 = vsub.s32 0, %v903
          %v905 = vrot.slane %v892, %v904
          %v906 = vlaneseq
          %v907 = vshrl.u32 %v906, 7
          %v908 = vsub.s32 0, %v907
          %v909 = vrot.slane %v893, %v908
          %v914 = vmul.f32 %v852, %v897
          %v915 = vmul.f32 %v853, %v897
          %v916 = vmul.f32 %v854, %v897
          %v917 = vmul.f32 %v855, %v897
          %v918 = vmul.f32 %v856, %v901
          %v919 = vmul.f32 %v857, %v901
          %v920 = vmul.f32 %v858, %v901
          %v921 = vmul.f32 %v859, %v901
          %v922 = vmul.f32 %v860, %v905
          %v923 = vmul.f32 %v861, %v905
          %v924 = vmul.f32 %v862, %v905
          %v925 = vmul.f32 %v863, %v905
          %v926 = vmul.f32 %v864, %v909
          %v927 = vmul.f32 %v865, %v909
          %v928 = vmul.f32 %v866, %v909
          %v929 = vmul.f32 %v867, %v909
          %v930 = vld [vmem:[%s443] sm:$0xf]
          %v931 = vlaneseq
          %v932 = vshrl.u32 %v931, 7
          %v933 = vsub.s32 0, %v932
          %v934 = vrot.slane %v930, %v933
          %936 = vbcast.lane.b32.xlu0 %v934, 256
          %v937 = vpop.permute.xlu0 %936
          %s939 = sor.u32 256, 8
          %940 = vbcast.lane.b32.xlu0 %v934, %s939
          %v941 = vpop.permute.xlu0 %940
          %s943 = sor.u32 256, 16
          %944 = vbcast.lane.b32.xlu0 %v934, %s943
          %v945 = vpop.permute.xlu0 %944
          %s947 = sor.u32 256, 24
          %948 = vbcast.lane.b32.xlu0 %v934, %s947
          %v949 = vpop.permute.xlu0 %948
          %v950 = vlaneseq
          %v951 = vshrl.u32 %v950, 7
          %v952 = vsub.s32 1, %v951
          %v953 = vrot.slane %v930, %v952
          %955 = vbcast.lane.b32.xlu0 %v953, 256
          %v956 = vpop.permute.xlu0 %955
          %s958 = sor.u32 256, 8
          %959 = vbcast.lane.b32.xlu0 %v953, %s958
          %v960 = vpop.permute.xlu0 %959
          %s962 = sor.u32 256, 16
          %963 = vbcast.lane.b32.xlu0 %v953, %s962
          %v964 = vpop.permute.xlu0 %963
          %s966 = sor.u32 256, 24
          %967 = vbcast.lane.b32.xlu0 %v953, %s966
          %v968 = vpop.permute.xlu0 %967
          %v969 = vlaneseq
          %v970 = vshrl.u32 %v969, 7
          %v971 = vsub.s32 2, %v970
          %v972 = vrot.slane %v930, %v971
          %974 = vbcast.lane.b32.xlu0 %v972, 256
          %v975 = vpop.permute.xlu0 %974
          %s977 = sor.u32 256, 8
          %978 = vbcast.lane.b32.xlu0 %v972, %s977
          %v979 = vpop.permute.xlu0 %978
          %s981 = sor.u32 256, 16
          %982 = vbcast.lane.b32.xlu0 %v972, %s981
          %v983 = vpop.permute.xlu0 %982
          %s985 = sor.u32 256, 24
          %986 = vbcast.lane.b32.xlu0 %v972, %s985
          %v987 = vpop.permute.xlu0 %986
          %v988 = vlaneseq
          %v989 = vshrl.u32 %v988, 7
          %v990 = vsub.s32 3, %v989
          %v991 = vrot.slane %v930, %v990
          %993 = vbcast.lane.b32.xlu0 %v991, 256
          %v994 = vpop.permute.xlu0 %993
          %s996 = sor.u32 256, 8
          %997 = vbcast.lane.b32.xlu0 %v991, %s996
          %v998 = vpop.permute.xlu0 %997
          %s1000 = sor.u32 256, 16
          %1001 = vbcast.lane.b32.xlu0 %v991, %s1000
          %v1002 = vpop.permute.xlu0 %1001
          %s1004 = sor.u32 256, 24
          %1005 = vbcast.lane.b32.xlu0 %v991, %s1004
          %v1006 = vpop.permute.xlu0 %1005
          %v1007 = vmul.f32 %v914, %v937
          %v1008 = vmul.f32 %v915, %v941
          %v1009 = vmul.f32 %v916, %v945
          %v1010 = vmul.f32 %v917, %v949
          %v1011 = vmul.f32 %v918, %v956
          %v1012 = vmul.f32 %v919, %v960
          %v1013 = vmul.f32 %v920, %v964
          %v1014 = vmul.f32 %v921, %v968
          %v1015 = vmul.f32 %v922, %v975
          %v1016 = vmul.f32 %v923, %v979
          %v1017 = vmul.f32 %v924, %v983
          %v1018 = vmul.f32 %v925, %v987
          %v1019 = vmul.f32 %v926, %v994
          %v1020 = vmul.f32 %v927, %v998
          %v1021 = vmul.f32 %v928, %v1002
          %v1022 = vmul.f32 %v929, %v1006
          %v1023 = vld [vmem:[#allocation3] sm:$0x1]
          %v1024 = vadd.f32 %v1023, 1.0
          %v1025 = vmul.f32 %v1023, 0.5
          %v1027 = vlaneseq
          %v1028 = vshrl.u32 %v1027, 7
          %v1029 = vsub.s32 0, %v1028
          %v1030 = vrot.slane %v1024, %v1029
          %v1032 = vmul.f32 %v1007, %v1030
          %v1033 = vmul.f32 %v1008, %v1030
          %v1034 = vmul.f32 %v1009, %v1030
          %v1035 = vmul.f32 %v1010, %v1030
          %v1036 = vmul.f32 %v1011, %v1030
          %v1037 = vmul.f32 %v1012, %v1030
          %v1038 = vmul.f32 %v1013, %v1030
          %v1039 = vmul.f32 %v1014, %v1030
          %v1040 = vmul.f32 %v1015, %v1030
          %v1041 = vmul.f32 %v1016, %v1030
          %v1042 = vmul.f32 %v1017, %v1030
          %v1043 = vmul.f32 %v1018, %v1030
          %v1044 = vmul.f32 %v1019, %v1030
          %v1045 = vmul.f32 %v1020, %v1030
          %v1046 = vmul.f32 %v1021, %v1030
          %v1047 = vmul.f32 %v1022, %v1030
          %v1049 = vlaneseq
          %v1050 = vshrl.u32 %v1049, 7
          %v1051 = vsub.s32 0, %v1050
          %v1052 = vrot.slane %v1025, %v1051
          %1053 = vrot.lane.b32.xlu0 %v1052, 96
          %v1054 = vpop.permute.xlu0 %1053
          %v1056 = vadd.f32 %v1032, %v1054
          %v1057 = vadd.f32 %v1033, %v1054
          %v1058 = vadd.f32 %v1034, %v1054
          %v1059 = vadd.f32 %v1035, %v1054
          %v1060 = vadd.f32 %v1036, %v1054
          %v1061 = vadd.f32 %v1037, %v1054
          %v1062 = vadd.f32 %v1038, %v1054
          %v1063 = vadd.f32 %v1039, %v1054
          %v1064 = vadd.f32 %v1040, %v1054
          %v1065 = vadd.f32 %v1041, %v1054
          %v1066 = vadd.f32 %v1042, %v1054
          %v1067 = vadd.f32 %v1043, %v1054
          %v1068 = vadd.f32 %v1044, %v1054
          %v1069 = vadd.f32 %v1045, %v1054
          %v1070 = vadd.f32 %v1046, %v1054
          %v1071 = vadd.f32 %v1047, %v1054
          %v1073 = vlaneseq
          %v1074 = vshrl.u32 %v1073, 7
          %v1075 = vsub.s32 0, %v1074
          %v1076 = vrot.slane %v1023, %v1075
          %1077 = vrot.lane.b32.xlu0 %v1076, 112
          %v1078 = vpop.permute.xlu0 %1077
          %v1080 = vmul.f32 %v1007, %v1078
          %v1081 = vmul.f32 %v1008, %v1078
          %v1082 = vmul.f32 %v1009, %v1078
          %v1083 = vmul.f32 %v1010, %v1078
          %v1084 = vmul.f32 %v1011, %v1078
          %v1085 = vmul.f32 %v1012, %v1078
          %v1086 = vmul.f32 %v1013, %v1078
          %v1087 = vmul.f32 %v1014, %v1078
          %v1088 = vmul.f32 %v1015, %v1078
          %v1089 = vmul.f32 %v1016, %v1078
          %v1090 = vmul.f32 %v1017, %v1078
          %v1091 = vmul.f32 %v1018, %v1078
          %v1092 = vmul.f32 %v1019, %v1078
          %v1093 = vmul.f32 %v1020, %v1078
          %v1094 = vmul.f32 %v1021, %v1078
          %v1095 = vmul.f32 %v1022, %v1078
          %1096 = vrot.lane.b32.xlu0 %v1052, 80
          %v1097 = vpop.permute.xlu0 %1096
          %v1099 = vadd.f32 %v1080, %v1097
          %v1100 = vadd.f32 %v1081, %v1097
          %v1101 = vadd.f32 %v1082, %v1097
          %v1102 = vadd.f32 %v1083, %v1097
          %v1103 = vadd.f32 %v1084, %v1097
          %v1104 = vadd.f32 %v1085, %v1097
          %v1105 = vadd.f32 %v1086, %v1097
          %v1106 = vadd.f32 %v1087, %v1097
          %v1107 = vadd.f32 %v1088, %v1097
          %v1108 = vadd.f32 %v1089, %v1097
          %v1109 = vadd.f32 %v1090, %v1097
          %v1110 = vadd.f32 %v1091, %v1097
          %v1111 = vadd.f32 %v1092, %v1097
          %v1112 = vadd.f32 %v1093, %v1097
          %v1113 = vadd.f32 %v1094, %v1097
          %v1114 = vadd.f32 %v1095, %v1097
          %v1115 = vmax.f32 %v1056, %v1099
          %v1116 = vmax.f32 %v1057, %v1100
          %v1117 = vmax.f32 %v1058, %v1101
          %v1118 = vmax.f32 %v1059, %v1102
          %v1119 = vmax.f32 %v1060, %v1103
          %v1120 = vmax.f32 %v1061, %v1104
          %v1121 = vmax.f32 %v1062, %v1105
          %v1122 = vmax.f32 %v1063, %v1106
          %v1123 = vmax.f32 %v1064, %v1107
          %v1124 = vmax.f32 %v1065, %v1108
          %v1125 = vmax.f32 %v1066, %v1109
          %v1126 = vmax.f32 %v1067, %v1110
          %v1127 = vmax.f32 %v1068, %v1111
          %v1128 = vmax.f32 %v1069, %v1112
          %v1129 = vmax.f32 %v1070, %v1113
          %v1130 = vmax.f32 %v1071, %v1114
          %vm1131 = vcmask 130048
          %1132 = vst.msk [vmem:[%s430] sm:$0xff] %vm1131, %v1115
          %1133 = vst.msk [vmem:[%s430 + $0x8] sm:$0xff] %vm1131, %v1116
          %1134 = vst.msk [vmem:[%s430 + $0x10] sm:$0xff] %vm1131, %v1117
          %1135 = vst.msk [vmem:[%s430 + $0x18] sm:$0xff] %vm1131, %v1118
          %1136 = vst.msk [vmem:[%s430 + $0x20] sm:$0xff] %vm1131, %v1119
          %1137 = vst.msk [vmem:[%s430 + $0x28] sm:$0xff] %vm1131, %v1120
          %1138 = vst.msk [vmem:[%s430 + $0x30] sm:$0xff] %vm1131, %v1121
          %1139 = vst.msk [vmem:[%s430 + $0x38] sm:$0xff] %vm1131, %v1122
          %1140 = vst.msk [vmem:[%s430 + $0x40] sm:$0xff] %vm1131, %v1123
          %1141 = vst.msk [vmem:[%s430 + $0x48] sm:$0xff] %vm1131, %v1124
          %1142 = vst.msk [vmem:[%s430 + $0x50] sm:$0xff] %vm1131, %v1125
          %1143 = vst.msk [vmem:[%s430 + $0x58] sm:$0xff] %vm1131, %v1126
          %1144 = vst.msk [vmem:[%s430 + $0x60] sm:$0xff] %vm1131, %v1127
          %1145 = vst.msk [vmem:[%s430 + $0x68] sm:$0xff] %vm1131, %v1128
          %1146 = vst.msk [vmem:[%s430 + $0x70] sm:$0xff] %vm1131, %v1129
          %1147 = vst.msk [vmem:[%s430 + $0x78] sm:$0xff] %vm1131, %v1130
        $region102: #{dyhead_block.3} parent=81 // pred_fallthru
          _
        %s1148 = sand.u32 %s215, 1
        %s1149 = sand.u32 %s215, 1
        %s1150 = smul.addr %s1149, 128
        %s1151 = scalar_lea.vmem [#allocation5], %s1150
        // Predicated region
        $region103: #{dyhead_block.3} parent=81 // pred_check
          %p1152 = pneg %p225
        $region104: #{dyhead_block.3} parent=81 // pred_check_branch
          %1154 = sbr.rel (%p1152) target = $region106
        $region105: #{dyhead_block.3} parent=81 // pred_region
          %s1155 = smul.u32 %s25, %s24
          %s1156 = smul.u32 4, %s1155
          %s1157 = smul.addr %s23, 32
          %s1158 = sadd.s32 %s1156, %s1157
          %s1159 = smul.addr %s1158, 8
          %s1160 = scalar_lea.vmem %s7, %s1159
          // Predicated region
          $region107: #{dyhead_block.3} parent=105 // pred_check
            _
          $region108: #{dyhead_block.3} parent=105 // pred_check_branch
            %1162 = sbr.rel (0) target = $region110
          $region109: #{dyhead_block.3} parent=105 // pred_region
            // Predicated region
            $region111: #{dyhead_block.3} parent=109 // pred_check
              _
            $region112: #{dyhead_block.3} parent=109 // pred_check_branch
              %1164 = sbr.rel (0) target = $region114
            $region113: #{dyhead_block.3} parent=109 // pred_region
              // Predicated region
              $region126: #{dyhead_block.3} parent=113 // pred_check
                _
              $region127: #{dyhead_block.3} parent=113 // pred_check_branch
                %1209 = sbr.rel (0) target = $region129
              $region128: #{dyhead_block.3} parent=113 // pred_region
                loop: start=0, step=1, limit=1
                $region130: #{dyhead_block.3} parent=128 // loop_pre_header
                  _
                $region131: #{dyhead_block.3} parent=128 // loop_header
                  %s1211 = sphi 0, %s1215
                  %p1212 = scmp.ge.s32.totalorder %s1211, 1
                  %s1216 = sphi %s1151, %s1151
                  %s1217 = sphi %s1160, %s1160
                $region132: #{dyhead_block.3} parent=128 // loop_header_branch
                  %1214 = sbr.rel (%p1212) target = $region136
                $region133: #{dyhead_block.3} parent=128 // loop_body
                  %v1218 = vld [vmem:[%s1216] sm:$0xff]
                  %1219 = vst [vmem:[%s1217] sm:$0xff] %v1218
                  %v1220 = vld [vmem:[%s1216 + $0x8] sm:$0xff]
                  %1221 = vst [vmem:[%s1217 + $0x8] sm:$0xff] %v1220
                  %v1222 = vld [vmem:[%s1216 + $0x10] sm:$0xff]
                  %1223 = vst [vmem:[%s1217 + $0x10] sm:$0xff] %v1222
                  %v1224 = vld [vmem:[%s1216 + $0x18] sm:$0xff]
                  %1225 = vst [vmem:[%s1217 + $0x18] sm:$0xff] %v1224
                  %v1226 = vld [vmem:[%s1216 + $0x20] sm:$0xff]
                  %1227 = vst [vmem:[%s1217 + $0x40] sm:$0xff] %v1226
                  %v1228 = vld [vmem:[%s1216 + $0x28] sm:$0xff]
                  %1229 = vst [vmem:[%s1217 + $0x48] sm:$0xff] %v1228
                  %v1230 = vld [vmem:[%s1216 + $0x30] sm:$0xff]
                  %1231 = vst [vmem:[%s1217 + $0x50] sm:$0xff] %v1230
                  %v1232 = vld [vmem:[%s1216 + $0x38] sm:$0xff]
                  %1233 = vst [vmem:[%s1217 + $0x58] sm:$0xff] %v1232
                  %v1234 = vld [vmem:[%s1216 + $0x40] sm:$0xff]
                  %1235 = vst [vmem:[%s1217 + $0x80] sm:$0xff] %v1234
                  %v1236 = vld [vmem:[%s1216 + $0x48] sm:$0xff]
                  %1237 = vst [vmem:[%s1217 + $0x88] sm:$0xff] %v1236
                  %v1238 = vld [vmem:[%s1216 + $0x50] sm:$0xff]
                  %1239 = vst [vmem:[%s1217 + $0x90] sm:$0xff] %v1238
                  %v1240 = vld [vmem:[%s1216 + $0x58] sm:$0xff]
                  %1241 = vst [vmem:[%s1217 + $0x98] sm:$0xff] %v1240
                  %v1242 = vld [vmem:[%s1216 + $0x60] sm:$0xff]
                  %1243 = vst [vmem:[%s1217 + $0xc0] sm:$0xff] %v1242
                  %v1244 = vld [vmem:[%s1216 + $0x68] sm:$0xff]
                  %1245 = vst [vmem:[%s1217 + $0xc8] sm:$0xff] %v1244
                  %v1246 = vld [vmem:[%s1216 + $0x70] sm:$0xff]
                  %1247 = vst [vmem:[%s1217 + $0xd0] sm:$0xff] %v1246
                  %v1248 = vld [vmem:[%s1216 + $0x78] sm:$0xff]
                  %1249 = vst [vmem:[%s1217 + $0xd8] sm:$0xff] %v1248
                $region134: #{dyhead_block.3} parent=128 // loop_footer
                  %s1215 = sadd.s32 1, %s1211
                $region135: #{dyhead_block.3} parent=128 // loop_footer_branch
                  %1210 = sbr.rel target = $region131
                $region136: #{dyhead_block.3} parent=128 // loop_exit
                  _
              $region129: #{dyhead_block.3} parent=113 // pred_fallthru
                _
              // Predicated region
              $region137: #{dyhead_block.3} parent=113 // pred_check
                _
              $region138: #{dyhead_block.3} parent=113 // pred_check_branch
                %1251 = sbr.rel target = $region140
              $region139: #{dyhead_block.3} parent=113 // pred_region
                _
              $region140: #{dyhead_block.3} parent=113 // pred_fallthru
                _
            $region114: #{dyhead_block.3} parent=109 // pred_fallthru
              _
            // Predicated region
            $region115: #{dyhead_block.3} parent=109 // pred_check
              _
            $region116: #{dyhead_block.3} parent=109 // pred_check_branch
              %1166 = sbr.rel target = $region118
            $region117: #{dyhead_block.3} parent=109 // pred_region
              loop: start=0, step=1, limit=1
              $region119: #{dyhead_block.3} parent=117 // loop_pre_header
                _
              $region120: #{dyhead_block.3} parent=117 // loop_header
                %s1169 = sphi 0, %s1173
                %p1170 = scmp.ge.s32.totalorder %s1169, 1
                %s1174 = sphi %s1151, %s1151
                %s1175 = sphi %s1160, %s1160
              $region121: #{dyhead_block.3} parent=117 // loop_header_branch
                %1172 = sbr.rel (%p1170) target = $region125
              $region122: #{dyhead_block.3} parent=117 // loop_body
                %v1176 = vld [vmem:[%s1174] sm:$0xff]
                %1177 = vst [vmem:[%s1175] sm:$0xff] %v1176
                %v1178 = vld [vmem:[%s1174 + $0x8] sm:$0xff]
                %1179 = vst [vmem:[%s1175 + $0x8] sm:$0xff] %v1178
                %v1180 = vld [vmem:[%s1174 + $0x10] sm:$0xff]
                %1181 = vst [vmem:[%s1175 + $0x10] sm:$0xff] %v1180
                %v1182 = vld [vmem:[%s1174 + $0x18] sm:$0xff]
                %1183 = vst [vmem:[%s1175 + $0x18] sm:$0xff] %v1182
                %v1184 = vld [vmem:[%s1174 + $0x20] sm:$0xff]
                %1185 = vst [vmem:[%s1175 + $0x40] sm:$0xff] %v1184
                %v1186 = vld [vmem:[%s1174 + $0x28] sm:$0xff]
                %1187 = vst [vmem:[%s1175 + $0x48] sm:$0xff] %v1186
                %v1188 = vld [vmem:[%s1174 + $0x30] sm:$0xff]
                %1189 = vst [vmem:[%s1175 + $0x50] sm:$0xff] %v1188
                %v1190 = vld [vmem:[%s1174 + $0x38] sm:$0xff]
                %1191 = vst [vmem:[%s1175 + $0x58] sm:$0xff] %v1190
                %v1192 = vld [vmem:[%s1174 + $0x40] sm:$0xff]
                %1193 = vst [vmem:[%s1175 + $0x80] sm:$0xff] %v1192
                %v1194 = vld [vmem:[%s1174 + $0x48] sm:$0xff]
                %1195 = vst [vmem:[%s1175 + $0x88] sm:$0xff] %v1194
                %v1196 = vld [vmem:[%s1174 + $0x50] sm:$0xff]
                %1197 = vst [vmem:[%s1175 + $0x90] sm:$0xff] %v1196
                %v1198 = vld [vmem:[%s1174 + $0x58] sm:$0xff]
                %1199 = vst [vmem:[%s1175 + $0x98] sm:$0xff] %v1198
                %v1200 = vld [vmem:[%s1174 + $0x60] sm:$0xff]
                %1201 = vst [vmem:[%s1175 + $0xc0] sm:$0xff] %v1200
                %v1202 = vld [vmem:[%s1174 + $0x68] sm:$0xff]
                %1203 = vst [vmem:[%s1175 + $0xc8] sm:$0xff] %v1202
                %v1204 = vld [vmem:[%s1174 + $0x70] sm:$0xff]
                %1205 = vst [vmem:[%s1175 + $0xd0] sm:$0xff] %v1204
                %v1206 = vld [vmem:[%s1174 + $0x78] sm:$0xff]
                %1207 = vst [vmem:[%s1175 + $0xd8] sm:$0xff] %v1206
              $region123: #{dyhead_block.3} parent=117 // loop_footer
                %s1173 = sadd.s32 1, %s1169
              $region124: #{dyhead_block.3} parent=117 // loop_footer_branch
                %1168 = sbr.rel target = $region120
              $region125: #{dyhead_block.3} parent=117 // loop_exit
                _
            $region118: #{dyhead_block.3} parent=109 // pred_fallthru
              _
          $region110: #{dyhead_block.3} parent=105 // pred_fallthru
            _
          %1252 = vnop
        $region106: #{dyhead_block.3} parent=81 // pred_fallthru
          _
      $region82: #{dyhead_block.3} parent=5 // pred_fallthru
        _
      %p1253 = scmp.le.s32.totalorder 2, %s13
      // Predicated region
      $region141: #{dyhead_block.3} parent=5 // pred_check
        %p1254 = pneg %p1253
      $region142: #{dyhead_block.3} parent=5 // pred_check_branch
        %1256 = sbr.rel (%p1254) target = $region144
      $region143: #{dyhead_block.3} parent=5 // pred_region
        %s1257 = ssub.s32 %s13, 2
        // Predicated region
        $region145: #{dyhead_block.3} parent=143 // pred_check
          %p1258 = pneg %p231
        $region146: #{dyhead_block.3} parent=143 // pred_check_branch
          %1260 = sbr.rel (%p1258) target = $region148
        $region147: #{dyhead_block.3} parent=143 // pred_region
          %s1261 = sand.u32 %s216, 1
          %s1262 = sand.u32 %s216, 1
          %s1263 = smul.addr %s1262, 128
          %s1264 = scalar_lea.vmem [#allocation5], %s1263
        $region148: #{dyhead_block.3} parent=143 // pred_fallthru
          _
      $region144: #{dyhead_block.3} parent=5 // pred_fallthru
        _
    $region6: #{dyhead_block.3} parent=1 // loop_footer
      %s17 = sadd.s32 1, %s13
    $region7: #{dyhead_block.3} parent=1 // loop_footer_branch
      %12 = sbr.rel target = $region3
    $region8: #{dyhead_block.3} parent=1 // loop_exit
      _

</llo_original>
